<compile_context>
chip_gen: v7x
topology: tpu7x:2x2x1
jax: 0.10.0
libtpu: 0.0.40
codegen_flags: <defaults>
</compile_context>

<pallas_src>
import math
import functools

import numpy as np
import jax
import jax.numpy as jnp
from jax.experimental import pallas as pl
from jax.experimental.pallas import tpu as pltpu


def _layer_norm(x, g, b, eps=1e-5):
    m = jnp.mean(x, axis=-1, keepdims=True)
    v = jnp.mean((x - m) ** 2, axis=-1, keepdims=True)
    return (x - m) * jax.lax.rsqrt(v + eps) * g + b


# --------------------------------------------------------------------------
# Single fused kernel. Activations are (B*S, feature): feature dim on lanes,
# collapsed batch*seq dim on sublanes. Everything stays in VMEM.
# --------------------------------------------------------------------------
def net_kernel(int_ref, emb_ref, w32_ref, wqkv_ref, w128_ref, vec_ref, bsf_ref,
               o_ref, *, batch, seq, heads, emb_dim, hidden, ffn, cpad):
    f32 = jnp.float32
    bf16 = jnp.bfloat16
    BS = batch * seq
    E = emb_dim
    H = hidden
    F = ffn
    dh = H // heads
    vpad = int_ref.shape[1] - 1

    # ---- consolidated per-feature vectors: static row/lane slices of one slab ----
    scale = vec_ref[0:1, 0:H]
    shift = vec_ref[1:2, 0:H]
    bqkv  = vec_ref[2:3, 0:3 * H]
    bo    = vec_ref[3:4, 0:H]
    ln1g  = vec_ref[4:5, 0:H]
    ln1b  = vec_ref[5:6, 0:H]
    b1    = vec_ref[6:7, 0:F]
    b2    = vec_ref[7:8, 0:H]
    ln2g  = vec_ref[8:9, 0:H]
    ln2b  = vec_ref[9:10, 0:H]
    bb    = vec_ref[10:11, 0:cpad]

    pe      = bsf_ref[:, 0:H]                       # (BS, H) positional encoding
    bd_mask = bsf_ref[:, H:H + BS]                  # 0 within batch, -1e30 across
    prev_ok = bsf_ref[:, H + BS:H + BS + 1]         # 0 at first position of each batch
    next_ok = bsf_ref[:, H + BS + 1:H + BS + 2]     # 0 at last position of each batch

    # ---- embedding as one-hot matmul (padding_idx row of the table is zero) ----
    viota = int_ref[:, 0:vpad]                      # precomputed lane iota (int32)
    tok   = int_ref[:, vpad:vpad + 1]               # (BS, 1) token ids
    onehot = jnp.where(viota == tok, 1.0, 0.0)      # f32, cast only at the dot
    x = jnp.dot(onehot.astype(bf16), emb_ref[...], preferred_element_type=f32)  # (BS,E)

    # ---- Conv1d(k=3, stride=1, pad=1): sublane rolls (XLU) + boundary masks,
    #      three accumulating dots (no im2col concat, no shift-matrix matmuls) ----
    x_prev = pltpu.roll(x, 1, axis=0) * prev_ok
    x_next = pltpu.roll(x, BS - 1, axis=0) * next_ok
    y = jnp.dot(x_prev.astype(bf16), w32_ref[0:E, :], preferred_element_type=f32)
    y = y + jnp.dot(x.astype(bf16), w32_ref[E:2 * E, :], preferred_element_type=f32)
    y = y + jnp.dot(x_next.astype(bf16), w32_ref[2 * E:3 * E, :],
                    preferred_element_type=f32)
    y = jnp.maximum(y * scale + shift, 0.0)         # conv bias + BN(eval) + ReLU

    # ---- positional encoding ----
    y = y + pe
    yb = y.astype(bf16)

    # ---- MHA: fused QKV projection, batch collapsed via block-diagonal mask ----
    qkv = jnp.dot(yb, wqkv_ref[...], preferred_element_type=f32) + bqkv   # (BS, 3H)
    q = qkv[:, 0:H]
    k = qkv[:, H:2 * H]
    v = qkv[:, 2 * H:3 * H]
    kt_bf = k.astype(bf16).T
    inv_scale = 1.0 / math.sqrt(dh)

    attn = jnp.zeros((BS, H), f32)
    for h in range(heads):                          # static unroll (few heads)
        hm = vec_ref[11 + h:12 + h, 0:H]            # (1, H) 0/1 head lane mask
        s = jnp.dot((q * hm).astype(bf16), kt_bf, preferred_element_type=f32)
        s = s * inv_scale + bd_mask                 # cross-batch entries -> -1e30
        s = s - jnp.max(s, axis=-1, keepdims=True)
        p = jnp.exp(s)
        p = p * pl.reciprocal(jnp.sum(p, axis=-1, keepdims=True), approx=True)
        attn = attn + jnp.dot(p.astype(bf16), (v * hm).astype(bf16),
                              preferred_element_type=f32)

    attn = jnp.dot(attn.astype(bf16), w32_ref[3 * E:3 * E + H, :],
                   preferred_element_type=f32) + bo

    x1 = _layer_norm(y + attn, ln1g, ln1b)          # norm1 (post-norm)

    # ---- feed-forward ----
    h1 = jnp.maximum(
        jnp.dot(x1.astype(bf16), w128_ref[0:H, 0:F], preferred_element_type=f32) + b1,
        0.0)
    ff = jnp.dot(h1.astype(bf16), w32_ref[3 * E + H:3 * E + H + F, :],
                 preferred_element_type=f32) + b2
    x2 = _layer_norm(x1 + ff, ln2g, ln2b)           # norm2

    # ---- AdaptiveMaxPool1d(1) over seq + Linear head (bf16 operands, f32 acc);
    #      pooled rows written straight to the lane-dense output slab ----
    wb = w128_ref[H:2 * H, 0:cpad]
    for b in range(batch):                          # static unroll (tiny B)
        pooled = jnp.max(x2[b * seq:(b + 1) * seq], axis=0, keepdims=True)  # (1, H)
        o_ref[b:b + 1, :] = jnp.dot(pooled.astype(bf16), wb,
                                    preferred_element_type=f32) + bb


def net_forward(tokens, p, pe, heads):
    B, S = tokens.shape
    V, E = p['emb'].shape
    H = p['conv_w'].shape[0]
    C = p['wb'].shape[0]
    F = p['w1'].shape[0]
    BS = B * S
    Vpad = ((V + 15) // 16) * 16
    CP = ((C + 127) // 128) * 128
    bf16 = jnp.bfloat16
    f32 = jnp.float32
    NEG = -1e30

    # ---- int slab: vocab lane-iota in lanes [0:Vpad], token id in lane Vpad ----
    viota = jnp.tile(jnp.arange(Vpad, dtype=jnp.int32)[None, :], (BS, 1))
    int_slab = jnp.concatenate(
        [viota, tokens.reshape(BS, 1).astype(jnp.int32)], axis=1)          # (BS, Vpad+1)

    # ---- bf16 weight slabs ----
    emb_pad = jnp.zeros((Vpad, E), f32).at[:V].set(p['emb']).astype(bf16)

    # rows [0:E]=tap k=0 (prev), [E:2E]=centre, [2E:3E]=next, then wo, then w2
    w_cat = jnp.transpose(p['conv_w'], (2, 1, 0)).reshape(3 * E, H)
    w32 = jnp.concatenate([w_cat, p['wo'].T, p['w2'].T], axis=0).astype(bf16)

    wqkv = p['wqkv'].T.astype(bf16)                                         # (H, 3H)

    W128 = max(F, CP)
    w1_pad = jnp.zeros((H, W128), f32).at[:, :F].set(p['w1'].T)
    wb_pad = jnp.zeros((H, W128), f32).at[:, :C].set(p['wb'].T)
    w128 = jnp.concatenate([w1_pad, wb_pad], axis=0).astype(bf16)           # (2H, W128)

    # ---- f32 vector slab: BN scale/shift, biases, LN params, head lane masks ----
    bn_scale = p['bn_g'] * jax.lax.rsqrt(p['bn_var'] + 0.005)
    bn_shift = (p['conv_b'] - p['bn_mean']) * bn_scale + p['bn_b']
    VW = max(128, 3 * H, F, CP)
    n_rows = 11 + heads
    vec = jnp.zeros((((n_rows + 7) // 8) * 8, VW), f32)
    rows = [bn_scale, bn_shift, p['bqkv'], p['bo'], p['ln1_g'], p['ln1_b'],
            p['b1'], p['b2'], p['ln2_g'], p['ln2_b'],
            jnp.zeros((CP,), f32).at[:C].set(p['bb'])]
    dh = H // heads
    lane = np.arange(H)
    for h in range(heads):
        rows.append(jnp.asarray(((lane // dh) == h).astype(np.float32)))
    for r, val in enumerate(rows):
        vec = vec.at[r, :val.shape[0]].set(val)

    # ---- f32 per-row slab: PE, block-diag score mask, conv boundary masks ----
    idx = np.arange(BS)
    bidx = idx // S
    bd = np.where(bidx[:, None] == bidx[None, :], 0.0, NEG).astype(np.float32)
    prev_ok = (idx % S != 0).astype(np.float32)
    next_ok = (idx % S != S - 1).astype(np.float32)
    BW = ((H + BS + 2 + 127) // 128) * 128
    bsf = jnp.zeros((BS, BW), f32)
    bsf = bsf.at[:, :H].set(jnp.tile(pe[:S], (B, 1)))
    bsf = bsf.at[:, H:H + BS].set(jnp.asarray(bd))
    bsf = bsf.at[:, H + BS].set(jnp.asarray(prev_ok))
    bsf = bsf.at[:, H + BS + 1].set(jnp.asarray(next_ok))

    out = pl.pallas_call(
        functools.partial(net_kernel, batch=B, seq=S, heads=heads,
                          emb_dim=E, hidden=H, ffn=F, cpad=CP),
        out_shape=jax.ShapeDtypeStruct((B, CP), f32),
    )(int_slab, emb_pad, w32, wqkv, w128, vec, bsf)
    return out[:, :C]


# --------------------------------------------------------------------------
# Glue: parameters + positional encoding + pure-JAX f32 reference.
# --------------------------------------------------------------------------
def make_pe(max_len, d_model):
    pos = jnp.arange(max_len, dtype=jnp.float32)[:, None]
    div = jnp.exp(jnp.arange(0, d_model, 2, dtype=jnp.float32)
                  * (-math.log(10000.0) / d_model))
    pe = jnp.zeros((max_len, d_model), jnp.float32)
    pe = pe.at[:, 0::2].set(jnp.sin(pos * div))
    pe = pe.at[:, 1::2].set(jnp.cos(pos * div))
    return pe


def init_params(key, vocab, E, H, C):
    ks = jax.random.split(key, 19)

    def rn(k, shape, scale):
        return (jax.random.normal(k, shape) * scale).astype(jnp.float32)

    p = {}
    emb = rn(ks[0], (vocab, E), 0.1)
    p['emb'] = emb.at[0].set(0.0)                      # padding_idx=0
    p['conv_w'] = rn(ks[1], (H, E, 3), 0.05)           # PyTorch Conv1d layout (O, I, K)
    p['conv_b'] = rn(ks[2], (H,), 0.05)
    p['bn_g'] = 1.0 + rn(ks[3], (H,), 0.05)
    p['bn_b'] = rn(ks[4], (H,), 0.05)
    p['bn_mean'] = jnp.zeros((H,), jnp.float32)        # running stats (eval mode)
    p['bn_var'] = jnp.ones((H,), jnp.float32)
    p['wqkv'] = rn(ks[5], (3 * H, H), 0.1)             # MHA in_proj_weight
    p['bqkv'] = rn(ks[6], (3 * H,), 0.05)
    p['wo'] = rn(ks[7], (H, H), 0.1)
    p['bo'] = rn(ks[8], (H,), 0.05)
    p['ln1_g'] = 1.0 + rn(ks[9], (H,), 0.05)
    p['ln1_b'] = rn(ks[10], (H,), 0.05)
    p['w1'] = rn(ks[11], (4 * H, H), 0.1)
    p['b1'] = rn(ks[12], (4 * H,), 0.05)
    p['w2'] = rn(ks[13], (H, 4 * H), 0.1)
    p['b2'] = rn(ks[14], (H,), 0.05)
    p['ln2_g'] = 1.0 + rn(ks[15], (H,), 0.05)
    p['ln2_b'] = rn(ks[16], (H,), 0.05)
    p['wb'] = rn(ks[17], (C, H), 0.1)                  # final Linear (out, in)
    p['bb'] = rn(ks[18], (C,), 0.05)
    return p


def net_forward_ref(tokens, p, pe, heads):
    x = jnp.take(p['emb'], tokens, axis=0)             # (B, S, E)
    xc = jnp.transpose(x, (0, 2, 1))                   # (B, E, S)  (NCW)
    y = jax.lax.conv_general_dilated(
        xc, p['conv_w'], window_strides=(1,), padding=[(1, 1)],
        dimension_numbers=('NCW', 'OIW', 'NCW'))
    y = y + p['conv_b'][None, :, None]
    y = (y - p['bn_mean'][None, :, None]) * jax.lax.rsqrt(p['bn_var'][None, :, None] + 0.005)
    y = y * p['bn_g'][None, :, None] + p['bn_b'][None, :, None]
    y = jnp.maximum(y, 0.0)
    y = jnp.transpose(y, (0, 2, 1))                    # (B, S, H)
    B, S, H = y.shape
    dh = H // heads
    y = y + pe[None, :S]
    qkv = y @ p['wqkv'].T + p['bqkv']
    q, k, v = jnp.split(qkv, 3, axis=-1)

    def split_heads(t):
        return t.reshape(B, S, heads, dh).transpose(0, 2, 1, 3)

    qh, kh, vh = map(split_heads, (q, k, v))
    s = jnp.einsum('bhqd,bhkd->bhqk', qh, kh) / math.sqrt(dh)
    pr = jax.nn.softmax(s, axis=-1)
    o = jnp.einsum('bhqk,bhkd->bhqd', pr, vh).transpose(0, 2, 1, 3).reshape(B, S, H)
    attn = o @ p['wo'].T + p['bo']

    def ln(t, g, b, eps=1e-5):
        m = t.mean(-1, keepdims=True)
        var = ((t - m) ** 2).mean(-1, keepdims=True)
        return (t - m) * jax.lax.rsqrt(var + eps) * g + b

    x1 = ln(y + attn, p['ln1_g'], p['ln1_b'])
    ff = jnp.maximum(x1 @ p['w1'].T + p['b1'], 0.0) @ p['w2'].T + p['b2']
    x2 = ln(x1 + ff, p['ln2_g'], p['ln2_b'])
    pooled = jnp.max(x2, axis=1)
    return pooled @ p['wb'].T + p['bb']


if __name__ == "__main__":
    # Small shapes consistent with the module (scaled-down Net):
    B, S = 2, 16
    VOCAB, E, H, HEADS, C = 41, 64, 32, 4, 5
    MAX_LEN = 256

    key = jax.random.PRNGKey(0)
    kp, kt = jax.random.split(key)
    params = init_params(kp, VOCAB, E, H, C)
    pe = make_pe(MAX_LEN, H)
    tokens = jax.random.randint(kt, (B, S), 0, VOCAB, dtype=jnp.int32)

    fwd = jax.jit(functools.partial(net_forward, heads=HEADS))
    out = fwd(tokens, params, pe)
    out = jax.block_until_ready(out)

    ref = net_forward_ref(tokens, params, pe, HEADS)
    assert out.shape == (B, C)
    # kernel uses bf16 matmul operands (f32 accumulation) vs the f32 reference
    np.testing.assert_allclose(np.asarray(out), np.asarray(ref), rtol=3e-2, atol=3e-2)
    print("KERNEL_OK")
</pallas_src>

<mosaic_0001>
module attributes {stable_mosaic.version = 11 : i64} {
  func.func @net_kernel(%arg0: memref<32x49xi32, #tpu.memory_space<vmem>>, %arg1: memref<48x64xbf16, #tpu.memory_space<vmem>>, %arg2: memref<352x32xbf16, #tpu.memory_space<vmem>>, %arg3: memref<32x96xbf16, #tpu.memory_space<vmem>>, %arg4: memref<64x128xbf16, #tpu.memory_space<vmem>>, %arg5: memref<16x128xf32, #tpu.memory_space<vmem>>, %arg6: memref<32x128xf32, #tpu.memory_space<vmem>>, %arg7: memref<2x128xf32, #tpu.memory_space<vmem>>) attributes {dimension_semantics = [], scalar_prefetch = 0 : i64, scratch_operands = 0 : i64, tpu.core_type = #tpu.core_type<tc>} {
    %c0 = arith.constant 0 : index
    %c0_0 = arith.constant 0 : index
    %0 = vector.load %arg5[%c0, %c0_0] : memref<16x128xf32, #tpu.memory_space<vmem>>, vector<1x32xf32>
    %c1 = arith.constant 1 : index
    %c0_1 = arith.constant 0 : index
    %1 = vector.load %arg5[%c1, %c0_1] : memref<16x128xf32, #tpu.memory_space<vmem>>, vector<1x32xf32>
    %c2 = arith.constant 2 : index
    %c0_2 = arith.constant 0 : index
    %2 = vector.load %arg5[%c2, %c0_2] : memref<16x128xf32, #tpu.memory_space<vmem>>, vector<1x96xf32>
    %c3 = arith.constant 3 : index
    %c0_3 = arith.constant 0 : index
    %3 = vector.load %arg5[%c3, %c0_3] : memref<16x128xf32, #tpu.memory_space<vmem>>, vector<1x32xf32>
    %c4 = arith.constant 4 : index
    %c0_4 = arith.constant 0 : index
    %4 = vector.load %arg5[%c4, %c0_4] : memref<16x128xf32, #tpu.memory_space<vmem>>, vector<1x32xf32>
    %c5 = arith.constant 5 : index
    %c0_5 = arith.constant 0 : index
    %5 = vector.load %arg5[%c5, %c0_5] : memref<16x128xf32, #tpu.memory_space<vmem>>, vector<1x32xf32>
    %c6 = arith.constant 6 : index
    %c0_6 = arith.constant 0 : index
    %6 = vector.load %arg5[%c6, %c0_6] : memref<16x128xf32, #tpu.memory_space<vmem>>, vector<1x128xf32>
    %c7 = arith.constant 7 : index
    %c0_7 = arith.constant 0 : index
    %7 = vector.load %arg5[%c7, %c0_7] : memref<16x128xf32, #tpu.memory_space<vmem>>, vector<1x32xf32>
    %c8 = arith.constant 8 : index
    %c0_8 = arith.constant 0 : index
    %8 = vector.load %arg5[%c8, %c0_8] : memref<16x128xf32, #tpu.memory_space<vmem>>, vector<1x32xf32>
    %c9 = arith.constant 9 : index
    %c0_9 = arith.constant 0 : index
    %9 = vector.load %arg5[%c9, %c0_9] : memref<16x128xf32, #tpu.memory_space<vmem>>, vector<1x32xf32>
    %c10 = arith.constant 10 : index
    %c0_10 = arith.constant 0 : index
    %10 = vector.load %arg5[%c10, %c0_10] : memref<16x128xf32, #tpu.memory_space<vmem>>, vector<1x128xf32>
    %c0_11 = arith.constant 0 : index
    %c0_12 = arith.constant 0 : index
    %11 = vector.load %arg6[%c0_11, %c0_12] : memref<32x128xf32, #tpu.memory_space<vmem>>, vector<32x32xf32>
    %c0_13 = arith.constant 0 : index
    %c32 = arith.constant 32 : index
    %12 = vector.load %arg6[%c0_13, %c32] : memref<32x128xf32, #tpu.memory_space<vmem>>, vector<32x32xf32>
    %c0_14 = arith.constant 0 : index
    %c64 = arith.constant 64 : index
    %13 = vector.load %arg6[%c0_14, %c64] : memref<32x128xf32, #tpu.memory_space<vmem>>, vector<32x1xf32>
    %c0_15 = arith.constant 0 : index
    %c65 = arith.constant 65 : index
    %14 = vector.load %arg6[%c0_15, %c65] : memref<32x128xf32, #tpu.memory_space<vmem>>, vector<32x1xf32>
    %c0_16 = arith.constant 0 : index
    %c0_17 = arith.constant 0 : index
    %15 = vector.load %arg0[%c0_16, %c0_17] : memref<32x49xi32, #tpu.memory_space<vmem>>, vector<32x48xi32>
    %c0_18 = arith.constant 0 : index
    %c48 = arith.constant 48 : index
    %16 = vector.load %arg0[%c0_18, %c48] : memref<32x49xi32, #tpu.memory_space<vmem>>, vector<32x1xi32>
    %17 = vector.broadcast %16 : vector<32x1xi32> to vector<32x48xi32>
    %18 = arith.cmpi eq, %15, %17 : vector<32x48xi32>
    %cst = arith.constant 1.000000e+00 : f32
    %cst_19 = arith.constant 0.000000e+00 : f32
    %19 = vector.broadcast %cst : f32 to vector<32x48xf32>
    %20 = vector.broadcast %cst_19 : f32 to vector<32x48xf32>
    %21 = arith.select %18, %19, %20 : vector<32x48xi1>, vector<32x48xf32>
    %22 = arith.truncf %21 : vector<32x48xf32> to vector<32x48xbf16>
    %c0_20 = arith.constant 0 : index
    %c0_21 = arith.constant 0 : index
    %23 = vector.load %arg1[%c0_20, %c0_21] : memref<48x64xbf16, #tpu.memory_space<vmem>>, vector<48x64xbf16>
    %cst_22 = arith.constant dense<0.000000e+00> : vector<32x64xf32>
    %24 = tpu.matmul %22, %23, %cst_22 {dimension_numbers = #tpu.dot_dimension_numbers<[1], [0], [0], [1], [0, 0, 1, 1], [], []>} : vector<32x48xbf16>, vector<48x64xbf16>, vector<32x64xf32> -> vector<32x64xf32>
    %c1_i32 = arith.constant 1 : i32
    %25 = tpu.dynamic_rotate %24 by %c1_i32 dim 0 : vector<32x64xf32>, i32 -> vector<32x64xf32>
    %26 = vector.broadcast %13 : vector<32x1xf32> to vector<32x64xf32>
    %27 = arith.mulf %25, %26 : vector<32x64xf32>
    %c31_i32 = arith.constant 31 : i32
    %28 = tpu.dynamic_rotate %24 by %c31_i32 dim 0 : vector<32x64xf32>, i32 -> vector<32x64xf32>
    %29 = vector.broadcast %14 : vector<32x1xf32> to vector<32x64xf32>
    %30 = arith.mulf %28, %29 : vector<32x64xf32>
    %31 = arith.truncf %27 : vector<32x64xf32> to vector<32x64xbf16>
    %c0_23 = arith.constant 0 : index
    %c0_24 = arith.constant 0 : index
    %32 = vector.load %arg2[%c0_23, %c0_24] : memref<352x32xbf16, #tpu.memory_space<vmem>>, vector<64x32xbf16>
    %cst_25 = arith.constant dense<0.000000e+00> : vector<32x32xf32>
    %33 = tpu.matmul %31, %32, %cst_25 {dimension_numbers = #tpu.dot_dimension_numbers<[1], [0], [0], [1], [0, 0, 1, 1], [], []>} : vector<32x64xbf16>, vector<64x32xbf16>, vector<32x32xf32> -> vector<32x32xf32>
    %34 = arith.truncf %24 : vector<32x64xf32> to vector<32x64xbf16>
    %c64_26 = arith.constant 64 : index
    %c0_27 = arith.constant 0 : index
    %35 = vector.load %arg2[%c64_26, %c0_27] : memref<352x32xbf16, #tpu.memory_space<vmem>>, vector<64x32xbf16>
    %cst_28 = arith.constant dense<0.000000e+00> : vector<32x32xf32>
    %36 = tpu.matmul %34, %35, %cst_28 {dimension_numbers = #tpu.dot_dimension_numbers<[1], [0], [0], [1], [0, 0, 1, 1], [], []>} : vector<32x64xbf16>, vector<64x32xbf16>, vector<32x32xf32> -> vector<32x32xf32>
    %37 = arith.addf %33, %36 : vector<32x32xf32>
    %38 = arith.truncf %30 : vector<32x64xf32> to vector<32x64xbf16>
    %c128 = arith.constant 128 : index
    %c0_29 = arith.constant 0 : index
    %39 = vector.load %arg2[%c128, %c0_29] : memref<352x32xbf16, #tpu.memory_space<vmem>>, vector<64x32xbf16>
    %cst_30 = arith.constant dense<0.000000e+00> : vector<32x32xf32>
    %40 = tpu.matmul %38, %39, %cst_30 {dimension_numbers = #tpu.dot_dimension_numbers<[1], [0], [0], [1], [0, 0, 1, 1], [], []>} : vector<32x64xbf16>, vector<64x32xbf16>, vector<32x32xf32> -> vector<32x32xf32>
    %41 = arith.addf %37, %40 : vector<32x32xf32>
    %42 = vector.broadcast %0 : vector<1x32xf32> to vector<32x32xf32>
    %43 = arith.mulf %41, %42 : vector<32x32xf32>
    %44 = vector.broadcast %1 : vector<1x32xf32> to vector<32x32xf32>
    %45 = arith.addf %43, %44 : vector<32x32xf32>
    %cst_31 = arith.constant 0.000000e+00 : f32
    %46 = vector.broadcast %cst_31 : f32 to vector<32x32xf32>
    %47 = arith.maximumf %45, %46 : vector<32x32xf32>
    %48 = arith.addf %47, %11 : vector<32x32xf32>
    %49 = arith.truncf %48 : vector<32x32xf32> to vector<32x32xbf16>
    %c0_32 = arith.constant 0 : index
    %c0_33 = arith.constant 0 : index
    %50 = vector.load %arg3[%c0_32, %c0_33] : memref<32x96xbf16, #tpu.memory_space<vmem>>, vector<32x96xbf16>
    %cst_34 = arith.constant dense<0.000000e+00> : vector<32x96xf32>
    %51 = tpu.matmul %49, %50, %cst_34 {dimension_numbers = #tpu.dot_dimension_numbers<[1], [0], [0], [1], [0, 0, 1, 1], [], []>} : vector<32x32xbf16>, vector<32x96xbf16>, vector<32x96xf32> -> vector<32x96xf32>
    %52 = vector.broadcast %2 : vector<1x96xf32> to vector<32x96xf32>
    %53 = arith.addf %51, %52 : vector<32x96xf32>
    %54 = vector.extract_strided_slice %53 {offsets = [0, 0], sizes = [32, 32], strides = [1, 1]} : vector<32x96xf32> to vector<32x32xf32>
    %55 = vector.extract_strided_slice %53 {offsets = [0, 32], sizes = [32, 32], strides = [1, 1]} : vector<32x96xf32> to vector<32x32xf32>
    %56 = vector.extract_strided_slice %53 {offsets = [0, 64], sizes = [32, 32], strides = [1, 1]} : vector<32x96xf32> to vector<32x32xf32>
    %57 = arith.truncf %55 : vector<32x32xf32> to vector<32x32xbf16>
    %58 = tpu.transpose %57, [1, 0] : vector<32x32xbf16> -> vector<32x32xbf16>
    %cst_35 = arith.constant 0.000000e+00 : f32
    %59 = vector.broadcast %cst_35 : f32 to vector<32x32xf32>
    %c11 = arith.constant 11 : index
    %c0_36 = arith.constant 0 : index
    %60 = vector.load %arg5[%c11, %c0_36] : memref<16x128xf32, #tpu.memory_space<vmem>>, vector<1x32xf32>
    %61 = vector.broadcast %60 : vector<1x32xf32> to vector<32x32xf32>
    %62 = arith.mulf %54, %61 : vector<32x32xf32>
    %63 = arith.truncf %62 : vector<32x32xf32> to vector<32x32xbf16>
    %cst_37 = arith.constant dense<0.000000e+00> : vector<32x32xf32>
    %64 = tpu.matmul %63, %58, %cst_37 {dimension_numbers = #tpu.dot_dimension_numbers<[1], [0], [0], [1], [0, 0, 1, 1], [], []>} : vector<32x32xbf16>, vector<32x32xbf16>, vector<32x32xf32> -> vector<32x32xf32>
    %cst_38 = arith.constant 0.353553385 : f32
    %65 = vector.broadcast %cst_38 : f32 to vector<32x32xf32>
    %66 = arith.mulf %64, %65 : vector<32x32xf32>
    %67 = arith.addf %66, %12 : vector<32x32xf32>
    %cst_39 = arith.constant dense<0xFF800000> : vector<32xf32>
    %68 = vector.multi_reduction <maximumf>, %67, %cst_39 [1] : vector<32x32xf32> to vector<32xf32>
    %69 = vector.shape_cast %68 : vector<32xf32> to vector<32x1xf32>
    %70 = vector.broadcast %69 : vector<32x1xf32> to vector<32x32xf32>
    %71 = arith.subf %67, %70 : vector<32x32xf32>
    %72 = math.exp %71 : vector<32x32xf32>
    %cst_40 = arith.constant dense<0.000000e+00> : vector<32xf32>
    %73 = vector.multi_reduction <add>, %72, %cst_40 [1] : vector<32x32xf32> to vector<32xf32>
    %74 = vector.shape_cast %73 : vector<32xf32> to vector<32x1xf32>
    %75 = tpu.reciprocal %74 {approx = true} : vector<32x1xf32> -> vector<32x1xf32>
    %76 = vector.broadcast %75 : vector<32x1xf32> to vector<32x32xf32>
    %77 = arith.mulf %72, %76 : vector<32x32xf32>
    %78 = arith.truncf %77 : vector<32x32xf32> to vector<32x32xbf16>
    %79 = vector.broadcast %60 : vector<1x32xf32> to vector<32x32xf32>
    %80 = arith.mulf %56, %79 : vector<32x32xf32>
    %81 = arith.truncf %80 : vector<32x32xf32> to vector<32x32xbf16>
    %cst_41 = arith.constant dense<0.000000e+00> : vector<32x32xf32>
    %82 = tpu.matmul %78, %81, %cst_41 {dimension_numbers = #tpu.dot_dimension_numbers<[1], [0], [0], [1], [0, 0, 1, 1], [], []>} : vector<32x32xbf16>, vector<32x32xbf16>, vector<32x32xf32> -> vector<32x32xf32>
    %83 = arith.addf %59, %82 : vector<32x32xf32>
    %c12 = arith.constant 12 : index
    %c0_42 = arith.constant 0 : index
    %84 = vector.load %arg5[%c12, %c0_42] : memref<16x128xf32, #tpu.memory_space<vmem>>, vector<1x32xf32>
    %85 = vector.broadcast %84 : vector<1x32xf32> to vector<32x32xf32>
    %86 = arith.mulf %54, %85 : vector<32x32xf32>
    %87 = arith.truncf %86 : vector<32x32xf32> to vector<32x32xbf16>
    %cst_43 = arith.constant dense<0.000000e+00> : vector<32x32xf32>
    %88 = tpu.matmul %87, %58, %cst_43 {dimension_numbers = #tpu.dot_dimension_numbers<[1], [0], [0], [1], [0, 0, 1, 1], [], []>} : vector<32x32xbf16>, vector<32x32xbf16>, vector<32x32xf32> -> vector<32x32xf32>
    %cst_44 = arith.constant 0.353553385 : f32
    %89 = vector.broadcast %cst_44 : f32 to vector<32x32xf32>
    %90 = arith.mulf %88, %89 : vector<32x32xf32>
    %91 = arith.addf %90, %12 : vector<32x32xf32>
    %cst_45 = arith.constant dense<0xFF800000> : vector<32xf32>
    %92 = vector.multi_reduction <maximumf>, %91, %cst_45 [1] : vector<32x32xf32> to vector<32xf32>
    %93 = vector.shape_cast %92 : vector<32xf32> to vector<32x1xf32>
    %94 = vector.broadcast %93 : vector<32x1xf32> to vector<32x32xf32>
    %95 = arith.subf %91, %94 : vector<32x32xf32>
    %96 = math.exp %95 : vector<32x32xf32>
    %cst_46 = arith.constant dense<0.000000e+00> : vector<32xf32>
    %97 = vector.multi_reduction <add>, %96, %cst_46 [1] : vector<32x32xf32> to vector<32xf32>
    %98 = vector.shape_cast %97 : vector<32xf32> to vector<32x1xf32>
    %99 = tpu.reciprocal %98 {approx = true} : vector<32x1xf32> -> vector<32x1xf32>
    %100 = vector.broadcast %99 : vector<32x1xf32> to vector<32x32xf32>
    %101 = arith.mulf %96, %100 : vector<32x32xf32>
    %102 = arith.truncf %101 : vector<32x32xf32> to vector<32x32xbf16>
    %103 = vector.broadcast %84 : vector<1x32xf32> to vector<32x32xf32>
    %104 = arith.mulf %56, %103 : vector<32x32xf32>
    %105 = arith.truncf %104 : vector<32x32xf32> to vector<32x32xbf16>
    %cst_47 = arith.constant dense<0.000000e+00> : vector<32x32xf32>
    %106 = tpu.matmul %102, %105, %cst_47 {dimension_numbers = #tpu.dot_dimension_numbers<[1], [0], [0], [1], [0, 0, 1, 1], [], []>} : vector<32x32xbf16>, vector<32x32xbf16>, vector<32x32xf32> -> vector<32x32xf32>
    %107 = arith.addf %83, %106 : vector<32x32xf32>
    %c13 = arith.constant 13 : index
    %c0_48 = arith.constant 0 : index
    %108 = vector.load %arg5[%c13, %c0_48] : memref<16x128xf32, #tpu.memory_space<vmem>>, vector<1x32xf32>
    %109 = vector.broadcast %108 : vector<1x32xf32> to vector<32x32xf32>
    %110 = arith.mulf %54, %109 : vector<32x32xf32>
    %111 = arith.truncf %110 : vector<32x32xf32> to vector<32x32xbf16>
    %cst_49 = arith.constant dense<0.000000e+00> : vector<32x32xf32>
    %112 = tpu.matmul %111, %58, %cst_49 {dimension_numbers = #tpu.dot_dimension_numbers<[1], [0], [0], [1], [0, 0, 1, 1], [], []>} : vector<32x32xbf16>, vector<32x32xbf16>, vector<32x32xf32> -> vector<32x32xf32>
    %cst_50 = arith.constant 0.353553385 : f32
    %113 = vector.broadcast %cst_50 : f32 to vector<32x32xf32>
    %114 = arith.mulf %112, %113 : vector<32x32xf32>
    %115 = arith.addf %114, %12 : vector<32x32xf32>
    %cst_51 = arith.constant dense<0xFF800000> : vector<32xf32>
    %116 = vector.multi_reduction <maximumf>, %115, %cst_51 [1] : vector<32x32xf32> to vector<32xf32>
    %117 = vector.shape_cast %116 : vector<32xf32> to vector<32x1xf32>
    %118 = vector.broadcast %117 : vector<32x1xf32> to vector<32x32xf32>
    %119 = arith.subf %115, %118 : vector<32x32xf32>
    %120 = math.exp %119 : vector<32x32xf32>
    %cst_52 = arith.constant dense<0.000000e+00> : vector<32xf32>
    %121 = vector.multi_reduction <add>, %120, %cst_52 [1] : vector<32x32xf32> to vector<32xf32>
    %122 = vector.shape_cast %121 : vector<32xf32> to vector<32x1xf32>
    %123 = tpu.reciprocal %122 {approx = true} : vector<32x1xf32> -> vector<32x1xf32>
    %124 = vector.broadcast %123 : vector<32x1xf32> to vector<32x32xf32>
    %125 = arith.mulf %120, %124 : vector<32x32xf32>
    %126 = arith.truncf %125 : vector<32x32xf32> to vector<32x32xbf16>
    %127 = vector.broadcast %108 : vector<1x32xf32> to vector<32x32xf32>
    %128 = arith.mulf %56, %127 : vector<32x32xf32>
    %129 = arith.truncf %128 : vector<32x32xf32> to vector<32x32xbf16>
    %cst_53 = arith.constant dense<0.000000e+00> : vector<32x32xf32>
    %130 = tpu.matmul %126, %129, %cst_53 {dimension_numbers = #tpu.dot_dimension_numbers<[1], [0], [0], [1], [0, 0, 1, 1], [], []>} : vector<32x32xbf16>, vector<32x32xbf16>, vector<32x32xf32> -> vector<32x32xf32>
    %131 = arith.addf %107, %130 : vector<32x32xf32>
    %c14 = arith.constant 14 : index
    %c0_54 = arith.constant 0 : index
    %132 = vector.load %arg5[%c14, %c0_54] : memref<16x128xf32, #tpu.memory_space<vmem>>, vector<1x32xf32>
    %133 = vector.broadcast %132 : vector<1x32xf32> to vector<32x32xf32>
    %134 = arith.mulf %54, %133 : vector<32x32xf32>
    %135 = arith.truncf %134 : vector<32x32xf32> to vector<32x32xbf16>
    %cst_55 = arith.constant dense<0.000000e+00> : vector<32x32xf32>
    %136 = tpu.matmul %135, %58, %cst_55 {dimension_numbers = #tpu.dot_dimension_numbers<[1], [0], [0], [1], [0, 0, 1, 1], [], []>} : vector<32x32xbf16>, vector<32x32xbf16>, vector<32x32xf32> -> vector<32x32xf32>
    %cst_56 = arith.constant 0.353553385 : f32
    %137 = vector.broadcast %cst_56 : f32 to vector<32x32xf32>
    %138 = arith.mulf %136, %137 : vector<32x32xf32>
    %139 = arith.addf %138, %12 : vector<32x32xf32>
    %cst_57 = arith.constant dense<0xFF800000> : vector<32xf32>
    %140 = vector.multi_reduction <maximumf>, %139, %cst_57 [1] : vector<32x32xf32> to vector<32xf32>
    %141 = vector.shape_cast %140 : vector<32xf32> to vector<32x1xf32>
    %142 = vector.broadcast %141 : vector<32x1xf32> to vector<32x32xf32>
    %143 = arith.subf %139, %142 : vector<32x32xf32>
    %144 = math.exp %143 : vector<32x32xf32>
    %cst_58 = arith.constant dense<0.000000e+00> : vector<32xf32>
    %145 = vector.multi_reduction <add>, %144, %cst_58 [1] : vector<32x32xf32> to vector<32xf32>
    %146 = vector.shape_cast %145 : vector<32xf32> to vector<32x1xf32>
    %147 = tpu.reciprocal %146 {approx = true} : vector<32x1xf32> -> vector<32x1xf32>
    %148 = vector.broadcast %147 : vector<32x1xf32> to vector<32x32xf32>
    %149 = arith.mulf %144, %148 : vector<32x32xf32>
    %150 = arith.truncf %149 : vector<32x32xf32> to vector<32x32xbf16>
    %151 = vector.broadcast %132 : vector<1x32xf32> to vector<32x32xf32>
    %152 = arith.mulf %56, %151 : vector<32x32xf32>
    %153 = arith.truncf %152 : vector<32x32xf32> to vector<32x32xbf16>
    %cst_59 = arith.constant dense<0.000000e+00> : vector<32x32xf32>
    %154 = tpu.matmul %150, %153, %cst_59 {dimension_numbers = #tpu.dot_dimension_numbers<[1], [0], [0], [1], [0, 0, 1, 1], [], []>} : vector<32x32xbf16>, vector<32x32xbf16>, vector<32x32xf32> -> vector<32x32xf32>
    %155 = arith.addf %131, %154 : vector<32x32xf32>
    %156 = arith.truncf %155 : vector<32x32xf32> to vector<32x32xbf16>
    %c192 = arith.constant 192 : index
    %c0_60 = arith.constant 0 : index
    %157 = vector.load %arg2[%c192, %c0_60] : memref<352x32xbf16, #tpu.memory_space<vmem>>, vector<32x32xbf16>
    %cst_61 = arith.constant dense<0.000000e+00> : vector<32x32xf32>
    %158 = tpu.matmul %156, %157, %cst_61 {dimension_numbers = #tpu.dot_dimension_numbers<[1], [0], [0], [1], [0, 0, 1, 1], [], []>} : vector<32x32xbf16>, vector<32x32xbf16>, vector<32x32xf32> -> vector<32x32xf32>
    %159 = vector.broadcast %3 : vector<1x32xf32> to vector<32x32xf32>
    %160 = arith.addf %158, %159 : vector<32x32xf32>
    %161 = arith.addf %48, %160 : vector<32x32xf32>
    %cst_62 = arith.constant dense<0.000000e+00> : vector<32xf32>
    %162 = vector.multi_reduction <add>, %161, %cst_62 [1] : vector<32x32xf32> to vector<32xf32>
    %163 = vector.shape_cast %162 : vector<32xf32> to vector<32x1xf32>
    %cst_63 = arith.constant 3.200000e+01 : f32
    %164 = vector.broadcast %cst_63 : f32 to vector<32x1xf32>
    %165 = arith.divf %163, %164 : vector<32x1xf32>
    %166 = vector.broadcast %165 : vector<32x1xf32> to vector<32x32xf32>
    %167 = arith.subf %161, %166 : vector<32x32xf32>
    %168 = arith.mulf %167, %167 : vector<32x32xf32>
    %cst_64 = arith.constant dense<0.000000e+00> : vector<32xf32>
    %169 = vector.multi_reduction <add>, %168, %cst_64 [1] : vector<32x32xf32> to vector<32xf32>
    %170 = vector.shape_cast %169 : vector<32xf32> to vector<32x1xf32>
    %cst_65 = arith.constant 3.200000e+01 : f32
    %171 = vector.broadcast %cst_65 : f32 to vector<32x1xf32>
    %172 = arith.divf %170, %171 : vector<32x1xf32>
    %173 = vector.broadcast %165 : vector<32x1xf32> to vector<32x32xf32>
    %174 = arith.subf %161, %173 : vector<32x32xf32>
    %cst_66 = arith.constant 9.99999974E-6 : f32
    %175 = vector.broadcast %cst_66 : f32 to vector<32x1xf32>
    %176 = arith.addf %172, %175 : vector<32x1xf32>
    %177 = math.rsqrt %176 : vector<32x1xf32>
    %178 = vector.broadcast %177 : vector<32x1xf32> to vector<32x32xf32>
    %179 = arith.mulf %174, %178 : vector<32x32xf32>
    %180 = vector.broadcast %4 : vector<1x32xf32> to vector<32x32xf32>
    %181 = arith.mulf %179, %180 : vector<32x32xf32>
    %182 = vector.broadcast %5 : vector<1x32xf32> to vector<32x32xf32>
    %183 = arith.addf %181, %182 : vector<32x32xf32>
    %184 = arith.truncf %183 : vector<32x32xf32> to vector<32x32xbf16>
    %c0_67 = arith.constant 0 : index
    %c0_68 = arith.constant 0 : index
    %185 = vector.load %arg4[%c0_67, %c0_68] : memref<64x128xbf16, #tpu.memory_space<vmem>>, vector<32x128xbf16>
    %cst_69 = arith.constant dense<0.000000e+00> : vector<32x128xf32>
    %186 = tpu.matmul %184, %185, %cst_69 {dimension_numbers = #tpu.dot_dimension_numbers<[1], [0], [0], [1], [0, 0, 1, 1], [], []>} : vector<32x32xbf16>, vector<32x128xbf16>, vector<32x128xf32> -> vector<32x128xf32>
    %187 = vector.broadcast %6 : vector<1x128xf32> to vector<32x128xf32>
    %188 = arith.addf %186, %187 : vector<32x128xf32>
    %cst_70 = arith.constant 0.000000e+00 : f32
    %189 = vector.broadcast %cst_70 : f32 to vector<32x128xf32>
    %190 = arith.maximumf %188, %189 : vector<32x128xf32>
    %191 = arith.truncf %190 : vector<32x128xf32> to vector<32x128xbf16>
    %c224 = arith.constant 224 : index
    %c0_71 = arith.constant 0 : index
    %192 = vector.load %arg2[%c224, %c0_71] : memref<352x32xbf16, #tpu.memory_space<vmem>>, vector<128x32xbf16>
    %cst_72 = arith.constant dense<0.000000e+00> : vector<32x32xf32>
    %193 = tpu.matmul %191, %192, %cst_72 {dimension_numbers = #tpu.dot_dimension_numbers<[1], [0], [0], [1], [0, 0, 1, 1], [], []>} : vector<32x128xbf16>, vector<128x32xbf16>, vector<32x32xf32> -> vector<32x32xf32>
    %194 = vector.broadcast %7 : vector<1x32xf32> to vector<32x32xf32>
    %195 = arith.addf %193, %194 : vector<32x32xf32>
    %196 = arith.addf %183, %195 : vector<32x32xf32>
    %cst_73 = arith.constant dense<0.000000e+00> : vector<32xf32>
    %197 = vector.multi_reduction <add>, %196, %cst_73 [1] : vector<32x32xf32> to vector<32xf32>
    %198 = vector.shape_cast %197 : vector<32xf32> to vector<32x1xf32>
    %cst_74 = arith.constant 3.200000e+01 : f32
    %199 = vector.broadcast %cst_74 : f32 to vector<32x1xf32>
    %200 = arith.divf %198, %199 : vector<32x1xf32>
    %201 = vector.broadcast %200 : vector<32x1xf32> to vector<32x32xf32>
    %202 = arith.subf %196, %201 : vector<32x32xf32>
    %203 = arith.mulf %202, %202 : vector<32x32xf32>
    %cst_75 = arith.constant dense<0.000000e+00> : vector<32xf32>
    %204 = vector.multi_reduction <add>, %203, %cst_75 [1] : vector<32x32xf32> to vector<32xf32>
    %205 = vector.shape_cast %204 : vector<32xf32> to vector<32x1xf32>
    %cst_76 = arith.constant 3.200000e+01 : f32
    %206 = vector.broadcast %cst_76 : f32 to vector<32x1xf32>
    %207 = arith.divf %205, %206 : vector<32x1xf32>
    %208 = vector.broadcast %200 : vector<32x1xf32> to vector<32x32xf32>
    %209 = arith.subf %196, %208 : vector<32x32xf32>
    %cst_77 = arith.constant 9.99999974E-6 : f32
    %210 = vector.broadcast %cst_77 : f32 to vector<32x1xf32>
    %211 = arith.addf %207, %210 : vector<32x1xf32>
    %212 = math.rsqrt %211 : vector<32x1xf32>
    %213 = vector.broadcast %212 : vector<32x1xf32> to vector<32x32xf32>
    %214 = arith.mulf %209, %213 : vector<32x32xf32>
    %215 = vector.broadcast %8 : vector<1x32xf32> to vector<32x32xf32>
    %216 = arith.mulf %214, %215 : vector<32x32xf32>
    %217 = vector.broadcast %9 : vector<1x32xf32> to vector<32x32xf32>
    %218 = arith.addf %216, %217 : vector<32x32xf32>
    %c32_78 = arith.constant 32 : index
    %c0_79 = arith.constant 0 : index
    %219 = vector.load %arg4[%c32_78, %c0_79] : memref<64x128xbf16, #tpu.memory_space<vmem>>, vector<32x128xbf16>
    %220 = vector.extract_strided_slice %218 {offsets = [0, 0], sizes = [16, 32], strides = [1, 1]} : vector<32x32xf32> to vector<16x32xf32>
    %cst_80 = arith.constant dense<0xFF800000> : vector<32xf32>
    %221 = vector.multi_reduction <maximumf>, %220, %cst_80 [0] : vector<16x32xf32> to vector<32xf32>
    %222 = vector.shape_cast %221 : vector<32xf32> to vector<1x32xf32>
    %223 = arith.truncf %222 : vector<1x32xf32> to vector<1x32xbf16>
    %cst_81 = arith.constant dense<0.000000e+00> : vector<1x128xf32>
    %224 = tpu.matmul %223, %219, %cst_81 {dimension_numbers = #tpu.dot_dimension_numbers<[1], [0], [0], [1], [0, 0, 1, 1], [], []>} : vector<1x32xbf16>, vector<32x128xbf16>, vector<1x128xf32> -> vector<1x128xf32>
    %225 = arith.addf %224, %10 : vector<1x128xf32>
    %c0_82 = arith.constant 0 : index
    %c0_83 = arith.constant 0 : index
    %226 = vector.load %arg7[%c0_82, %c0_83] : memref<2x128xf32, #tpu.memory_space<vmem>>, vector<1x128xf32>
    tpu.vector_store %arg7[%c0_82, %c0_83], %225 {strides = array<i32>} : memref<2x128xf32, #tpu.memory_space<vmem>>, vector<1x128xf32>,
    %227 = vector.extract_strided_slice %218 {offsets = [16, 0], sizes = [16, 32], strides = [1, 1]} : vector<32x32xf32> to vector<16x32xf32>
    %cst_84 = arith.constant dense<0xFF800000> : vector<32xf32>
    %228 = vector.multi_reduction <maximumf>, %227, %cst_84 [0] : vector<16x32xf32> to vector<32xf32>
    %229 = vector.shape_cast %228 : vector<32xf32> to vector<1x32xf32>
    %230 = arith.truncf %229 : vector<1x32xf32> to vector<1x32xbf16>
    %cst_85 = arith.constant dense<0.000000e+00> : vector<1x128xf32>
    %231 = tpu.matmul %230, %219, %cst_85 {dimension_numbers = #tpu.dot_dimension_numbers<[1], [0], [0], [1], [0, 0, 1, 1], [], []>} : vector<1x32xbf16>, vector<32x128xbf16>, vector<1x128xf32> -> vector<1x128xf32>
    %232 = arith.addf %231, %10 : vector<1x128xf32>
    %c1_86 = arith.constant 1 : index
    %c0_87 = arith.constant 0 : index
    %233 = vector.load %arg7[%c1_86, %c0_87] : memref<2x128xf32, #tpu.memory_space<vmem>>, vector<1x128xf32>
    tpu.vector_store %arg7[%c1_86, %c0_87], %232 {strides = array<i32>} : memref<2x128xf32, #tpu.memory_space<vmem>>, vector<1x128xf32>,
    return
  }
}

</mosaic_0001>

<llo_original>
// kernel: net_forward.1
$region0: #{net_forward.1}
  #allocation0 [shape = 'u32[]', space=smem, size = 0x4, offset = 0x4, fixed_abs, tag = 'smem constant byte address 0x4 - core index']
  #allocation1 [shape = 'u32[144,128]{1,0:T(1,128)}', space=vmem, size = 0x12000, scoped, tag = 'internal scratch']
  %s0 = inlined_call_operand.vmem [shape: s32[32,49], index: 0, kind: input, shape index: {}]
  %s1 = inlined_call_operand.vmem [shape: bf16[48,64], index: 1, kind: input, shape index: {}]
  %s2 = inlined_call_operand.vmem [shape: bf16[352,32], index: 2, kind: input, shape index: {}]
  %s3 = inlined_call_operand.vmem [shape: bf16[32,96], index: 3, kind: input, shape index: {}]
  %s4 = inlined_call_operand.vmem [shape: bf16[64,128], index: 4, kind: input, shape index: {}]
  %s5 = inlined_call_operand.vmem [shape: f32[16,128], index: 5, kind: input, shape index: {}]
  %s6 = inlined_call_operand.vmem [shape: f32[32,128], index: 6, kind: input, shape index: {}]
  %s7 = inlined_call_operand.hbm [shape: f32[2,128], index: 7, kind: output, shape index: {}]
  %s8 = sld [smem:[#allocation0]]
  $region38: #{net_forward.1} parent=0
    _
  %s10 = ssub.s32 1, %s8
  %s11 = scalar_select 0, %s10, %s8
  $region1: #{net_forward.1} parent=0
    #allocation2 [shape = 'u8[1024]{0}', space=vmem, size = 0x400, scoped, tag = 'output window, operand 0, single buffered']
    #allocation3 [shape = 's32[1]{0}', space=sflag, size = 0x4, scoped, tag = 'scoped memory for net_forward.1']
    %12 = vsyncpa [#allocation3], 0
    // Predicated region
    $region2: #{net_forward.1} parent=1 // pred_check
      _
    $region3: #{net_forward.1} parent=1 // pred_check_branch
      %14 = sbr.rel (0) target = $region5
    $region4: #{net_forward.1} parent=1 // pred_region
      _
    $region5: #{net_forward.1} parent=1 // pred_fallthru
      _
    // Predicated region
    $region6: #{net_forward.1} parent=1 // pred_check
      _
    $region7: #{net_forward.1} parent=1 // pred_check_branch
      %16 = sbr.rel (0) target = $region9
    $region8: #{net_forward.1} parent=1 // pred_region
      _
    $region9: #{net_forward.1} parent=1 // pred_fallthru
      _
    // Predicated region
    $region10: #{net_forward.1} parent=1 // pred_check
      _
    $region11: #{net_forward.1} parent=1 // pred_check_branch
      %18 = sbr.rel (0) target = $region13
    $region12: #{net_forward.1} parent=1 // pred_region
      _
    $region13: #{net_forward.1} parent=1 // pred_fallthru
      _
    // Predicated region
    $region14: #{net_forward.1} parent=1 // pred_check
      _
    $region15: #{net_forward.1} parent=1 // pred_check_branch
      %20 = sbr.rel (0) target = $region17
    $region16: #{net_forward.1} parent=1 // pred_region
      _
    $region17: #{net_forward.1} parent=1 // pred_fallthru
      _
    // Predicated region
    $region18: #{net_forward.1} parent=1 // pred_check
      _
    $region19: #{net_forward.1} parent=1 // pred_check_branch
      %22 = sbr.rel (0) target = $region21
    $region20: #{net_forward.1} parent=1 // pred_region
      _
    $region21: #{net_forward.1} parent=1 // pred_fallthru
      _
    // Predicated region
    $region22: #{net_forward.1} parent=1 // pred_check
      _
    $region23: #{net_forward.1} parent=1 // pred_check_branch
      %24 = sbr.rel (0) target = $region25
    $region24: #{net_forward.1} parent=1 // pred_region
      _
    $region25: #{net_forward.1} parent=1 // pred_fallthru
      _
    // Predicated region
    $region26: #{net_forward.1} parent=1 // pred_check
      _
    $region27: #{net_forward.1} parent=1 // pred_check_branch
      %26 = sbr.rel (0) target = $region29
    $region28: #{net_forward.1} parent=1 // pred_region
      _
    $region29: #{net_forward.1} parent=1 // pred_fallthru
      _
    %v28 = vld [vmem:[%s5] sm:$0x1]
    %v29 = vld [vmem:[%s5 + $0x1] sm:$0x1]
    %v30 = vld [vmem:[%s5 + $0x2] sm:$0x1]
    %v31 = vld [vmem:[%s5 + $0x3] sm:$0x1]
    %v32 = vld [vmem:[%s5 + $0x4] sm:$0x1]
    %v33 = vld [vmem:[%s5 + $0x5] sm:$0x1]
    %v34 = vld [vmem:[%s5 + $0x6] sm:$0x1]
    %v35 = vld [vmem:[%s5 + $0x7] sm:$0x1]
    %v36 = vld [vmem:[%s5 + $0x8] sm:$0x1]
    %v37 = vld [vmem:[%s5 + $0x9] sm:$0x1]
    %v38 = vld [vmem:[%s5 + $0xa] sm:$0x1]
    %v39 = vld [vmem:[%s6] sm:$0xff]
    %v40 = vld [vmem:[%s6 + $0x8] sm:$0xff]
    %v41 = vld [vmem:[%s6 + $0x10] sm:$0xff]
    %v42 = vld [vmem:[%s6 + $0x18] sm:$0xff]
    %v43 = vld [vmem:[%s0] sm:$0xff]
    %v44 = vld [vmem:[%s0 + $0x8] sm:$0xff]
    %v45 = vld [vmem:[%s0 + $0x10] sm:$0xff]
    %v46 = vld [vmem:[%s0 + $0x18] sm:$0xff]
    %47 = vset.pattern.permute.xlu0 48
    %48 = vperm.xlu0 %47, %v43
    %v49 = vpop.permute.xlu0 %48
    %50 = vset.pattern.permute.xlu0 48
    %51 = vperm.xlu0 %50, %v44
    %v52 = vpop.permute.xlu0 %51
    %53 = vset.pattern.permute.xlu0 48
    %54 = vperm.xlu0 %53, %v45
    %v55 = vpop.permute.xlu0 %54
    %56 = vset.pattern.permute.xlu0 48
    %57 = vperm.xlu0 %56, %v46
    %v58 = vpop.permute.xlu0 %57
    %vm59 = vcmp.eq.s32.totalorder %v43, %v49
    %vm60 = vcmp.eq.s32.totalorder %v44, %v52
    %vm61 = vcmp.eq.s32.totalorder %v45, %v55
    %vm62 = vcmp.eq.s32.totalorder %v46, %v58
    %v63 = vsel %vm59, 1.0, 0.0
    %v64 = vsel %vm60, 1.0, 0.0
    %v65 = vsel %vm61, 1.0, 0.0
    %v66 = vsel %vm62, 1.0, 0.0
    %v67 = vpack.c.bf16 %v64, %v63
    %v68 = vpack.c.bf16 %v66, %v65
    %v69 = vld [vmem:[%s1] sm:$0xf]
    %v70 = vld [vmem:[%s1 + $0x4] sm:$0xf]
    %v71 = vld [vmem:[%s1 + $0x8] sm:$0xf]
    %v72 = vld [vmem:[%s1 + $0xc] sm:$0xf]
    %v73 = vld [vmem:[%s1 + $0x10] sm:$0xf]
    %v74 = vld [vmem:[%s1 + $0x14] sm:$0xf]
    %v81 = vunpack.c.l.b16 %v69
    %v82 = vunpack.c.l.b16 %v70
    %v83 = vunpack.c.l.b16 %v71
    %v84 = vunpack.c.l.b16 %v72
    %v85 = vunpack.c.l.b16 %v73
    %v86 = vunpack.c.l.b16 %v74
    %v87 = vpack.c.b16 %v82, %v81
    %v88 = vpack.c.b16 %v84, %v83
    %v89 = vpack.c.b16 %v86, %v85
    %vm93 = vcmask 392192
    %v95 = vsel %vm93, %v67, 0
    %v98 = vsel %vm93, %v68, 0
    %100 = vmatprep.subr.bf16.mxu0 0
    %101 = vmatpush1.bf16.msra.mxu0 %v87
    %102 = vmatprep.subr.bf16.mxu0 0
    %103 = vmatpush1.bf16.msra.mxu0 %v88
    %104 = vmatprep.subr.bf16.mxu0 0
    %105 = vmatpush1.bf16.msra.mxu0 %v89
    %106 = vmatprep.subr.bf16.mxu0 0
    %107 = vmatpush1.bf16.msra.mxu0 0
    %108 = vmatprep.subr.bf16.mxu0 0
    %109 = vmatpush1.bf16.msra.mxu0 0
    %110 = vmatprep.subr.bf16.mxu0 0
    %111 = vmatpush1.bf16.msra.mxu0 0
    %112 = vmatprep.subr.bf16.mxu0 0
    %113 = vmatpush1.bf16.msra.mxu0 0
    %114 = vmatprep.subr.bf16.mxu0 0
    %115 = vmatpush1.bf16.msra.mxu0 0
    %116 = vmatprep.subr.bf16.mxu0 0
    %117 = vmatpush1.bf16.msra.mxu0 0
    %118 = vmatprep.subr.bf16.mxu0 0
    %119 = vmatpush1.bf16.msra.mxu0 0
    %120 = vmatprep.subr.bf16.mxu0 0
    %121 = vmatpush1.bf16.msra.mxu0 0
    %122 = vmatprep.subr.bf16.mxu0 0
    %123 = vmatpush1.bf16.msra.mxu0 0
    %124 = vmatprep.subr.bf16.mxu0 0
    %125 = vmatpush1.bf16.msra.mxu0 0
    %126 = vmatprep.subr.bf16.mxu0 0
    %127 = vmatpush1.bf16.msra.mxu0 0
    %128 = vmatprep.subr.bf16.mxu0 0
    %129 = vmatpush1.bf16.msra.mxu0 0
    %130 = vmatprep.subr.bf16.mxu0 0
    %131 = vmatpush1.bf16.msra.mxu0 0
    %132 = vmatprep.mubr.bf16.mxu0 0
    %133 = vmatmul.mubr.bf16.gmra.mrb[0].mxu0 %v95
    %v134 = vpop.f32.mrb[0].mxu0
    %v135 = vadd.f32 0.0, %v134
    %v136 = vpop.f32.mrb[0].mxu0
    %v137 = vpop.f32.mrb[0].mxu0
    %v138 = vadd.f32 0.0, %v137
    %v139 = vpop.f32.mrb[0].mxu0
    %140 = vmatprep.mubr.bf16.mxu0 0
    %141 = vmatmul.mubr.bf16.gmra.mrb[0].mxu0 %v98
    %v142 = vpop.f32.mrb[0].mxu0
    %v143 = vadd.f32 0.0, %v142
    %v144 = vpop.f32.mrb[0].mxu0
    %v145 = vpop.f32.mrb[0].mxu0
    %v146 = vadd.f32 0.0, %v145
    %v147 = vpop.f32.mrb[0].mxu0
    %148 = vdwg.mxu0
    %v149 = vrot.slane %v135, 7
    %v150 = vrot.slane %v138, 7
    %v151 = vrot.slane %v143, 7
    %v152 = vrot.slane %v146, 7
    %v153 = vlaneseq
    %v154 = vshrl.u32 %v153, 7
    %vm155 = vcmp.lt.s32.totalorder %v154, 1
    %v156 = vsel %vm155, %v151, %v152
    %v157 = vsel %vm155, %v150, %v151
    %v158 = vsel %vm155, %v149, %v150
    %v159 = vsel %vm155, %v152, %v149
    %161 = vset.pattern.permute.xlu0 64
    %162 = vperm.xlu0 %161, %v39
    %v163 = vpop.permute.xlu0 %162
    %166 = vset.pattern.permute.xlu0 64
    %167 = vperm.xlu0 %166, %v40
    %v168 = vpop.permute.xlu0 %167
    %171 = vset.pattern.permute.xlu0 64
    %172 = vperm.xlu0 %171, %v41
    %v173 = vpop.permute.xlu0 %172
    %176 = vset.pattern.permute.xlu0 64
    %177 = vperm.xlu0 %176, %v42
    %v178 = vpop.permute.xlu0 %177
    %v180 = vmul.f32 %v159, %v163
    %v181 = vmul.f32 %v158, %v168
    %v182 = vmul.f32 %v157, %v173
    %v183 = vmul.f32 %v156, %v178
    %v184 = vrot.slane %v135, 1
    %v185 = vrot.slane %v138, 1
    %v186 = vrot.slane %v143, 1
    %v187 = vrot.slane %v146, 1
    %vm188 = vcmp.lt.s32.totalorder %v154, 7
    %v189 = vsel %vm188, %v186, %v187
    %v190 = vsel %vm188, %v185, %v186
    %v191 = vsel %vm188, %v184, %v185
    %v192 = vsel %vm188, %v187, %v184
    %193 = vset.pattern.permute.xlu0 65
    %194 = vperm.xlu0 %193, %v39
    %v195 = vpop.permute.xlu0 %194
    %197 = vset.pattern.permute.xlu0 65
    %198 = vperm.xlu0 %197, %v40
    %v199 = vpop.permute.xlu0 %198
    %201 = vset.pattern.permute.xlu0 65
    %202 = vperm.xlu0 %201, %v41
    %v203 = vpop.permute.xlu0 %202
    %205 = vset.pattern.permute.xlu0 65
    %206 = vperm.xlu0 %205, %v42
    %v207 = vpop.permute.xlu0 %206
    %v209 = vmul.f32 %v191, %v195
    %v210 = vmul.f32 %v190, %v199
    %v211 = vmul.f32 %v189, %v203
    %v212 = vmul.f32 %v192, %v207
    %v213 = vpack.c.bf16 %v181, %v180
    %v214 = vpack.c.bf16 %v183, %v182
    %v215 = vld [vmem:[%s2] sm:$0xf]
    %v216 = vld [vmem:[%s2 + $0x4] sm:$0xf]
    %v217 = vld [vmem:[%s2 + $0x8] sm:$0xf]
    %v218 = vld [vmem:[%s2 + $0xc] sm:$0xf]
    %v219 = vld [vmem:[%s2 + $0x10] sm:$0xf]
    %v220 = vld [vmem:[%s2 + $0x14] sm:$0xf]
    %v221 = vld [vmem:[%s2 + $0x18] sm:$0xf]
    %v222 = vld [vmem:[%s2 + $0x1c] sm:$0xf]
    %v223 = vpack.c.bf16 %v138, %v135
    %v224 = vpack.c.bf16 %v146, %v143
    %v225 = vld [vmem:[%s2 + $0x20] sm:$0xf]
    %v226 = vld [vmem:[%s2 + $0x24] sm:$0xf]
    %v227 = vld [vmem:[%s2 + $0x28] sm:$0xf]
    %v228 = vld [vmem:[%s2 + $0x2c] sm:$0xf]
    %v229 = vld [vmem:[%s2 + $0x30] sm:$0xf]
    %v230 = vld [vmem:[%s2 + $0x34] sm:$0xf]
    %v231 = vld [vmem:[%s2 + $0x38] sm:$0xf]
    %v232 = vld [vmem:[%s2 + $0x3c] sm:$0xf]
    %v241 = vunpack.c.l.b16 %v225
    %v242 = vunpack.c.l.b16 %v226
    %v243 = vunpack.c.l.b16 %v227
    %v244 = vunpack.c.l.b16 %v228
    %v245 = vunpack.c.l.b16 %v229
    %v246 = vunpack.c.l.b16 %v230
    %v247 = vunpack.c.l.b16 %v231
    %v248 = vunpack.c.l.b16 %v232
    %v249 = vpack.c.b16 %v242, %v241
    %v250 = vpack.c.b16 %v244, %v243
    %v251 = vpack.c.b16 %v246, %v245
    %v252 = vpack.c.b16 %v248, %v247
    %vm257 = vcmask 523264
    %v259 = vsel %vm257, %v223, 0
    %v262 = vsel %vm257, %v224, 0
    %264 = vmatprep.subr.bf16.mxu0 0
    %265 = vmatpush1.bf16.msra.mxu0 %v249
    %266 = vmatprep.subr.bf16.mxu0 0
    %267 = vmatpush1.bf16.msra.mxu0 %v250
    %268 = vmatprep.subr.bf16.mxu0 0
    %269 = vmatpush1.bf16.msra.mxu0 %v251
    %270 = vmatprep.subr.bf16.mxu0 0
    %271 = vmatpush1.bf16.msra.mxu0 %v252
    %272 = vmatprep.subr.bf16.mxu0 0
    %273 = vmatpush1.bf16.msra.mxu0 0
    %274 = vmatprep.subr.bf16.mxu0 0
    %275 = vmatpush1.bf16.msra.mxu0 0
    %276 = vmatprep.subr.bf16.mxu0 0
    %277 = vmatpush1.bf16.msra.mxu0 0
    %278 = vmatprep.subr.bf16.mxu0 0
    %279 = vmatpush1.bf16.msra.mxu0 0
    %280 = vmatprep.subr.bf16.mxu0 0
    %281 = vmatpush1.bf16.msra.mxu0 0
    %282 = vmatprep.subr.bf16.mxu0 0
    %283 = vmatpush1.bf16.msra.mxu0 0
    %284 = vmatprep.subr.bf16.mxu0 0
    %285 = vmatpush1.bf16.msra.mxu0 0
    %286 = vmatprep.subr.bf16.mxu0 0
    %287 = vmatpush1.bf16.msra.mxu0 0
    %288 = vmatprep.subr.bf16.mxu0 0
    %289 = vmatpush1.bf16.msra.mxu0 0
    %290 = vmatprep.subr.bf16.mxu0 0
    %291 = vmatpush1.bf16.msra.mxu0 0
    %292 = vmatprep.subr.bf16.mxu0 0
    %293 = vmatpush1.bf16.msra.mxu0 0
    %294 = vmatprep.subr.bf16.mxu0 0
    %295 = vmatpush1.bf16.msra.mxu0 0
    %296 = vmatprep.mubr.bf16.mxu0 0
    %297 = vmatmul.mubr.bf16.gmra.mrb[0].mxu0 %v259
    %v298 = vpop.f32.mrb[0].mxu0
    %v299 = vadd.f32 0.0, %v298
    %v300 = vpop.f32.mrb[0].mxu0
    %v301 = vpop.f32.mrb[0].mxu0
    %v302 = vadd.f32 0.0, %v301
    %v303 = vpop.f32.mrb[0].mxu0
    %304 = vmatprep.mubr.bf16.mxu0 0
    %305 = vmatmul.mubr.bf16.gmra.mrb[0].mxu0 %v262
    %v306 = vpop.f32.mrb[0].mxu0
    %v307 = vadd.f32 0.0, %v306
    %v308 = vpop.f32.mrb[0].mxu0
    %v309 = vpop.f32.mrb[0].mxu0
    %v310 = vadd.f32 0.0, %v309
    %v311 = vpop.f32.mrb[0].mxu0
    %312 = vdwg.mxu0
    %v321 = vunpack.c.l.b16 %v215
    %v322 = vunpack.c.l.b16 %v216
    %v323 = vunpack.c.l.b16 %v217
    %v324 = vunpack.c.l.b16 %v218
    %v325 = vunpack.c.l.b16 %v219
    %v326 = vunpack.c.l.b16 %v220
    %v327 = vunpack.c.l.b16 %v221
    %v328 = vunpack.c.l.b16 %v222
    %v329 = vpack.c.b16 %v322, %v321
    %v330 = vpack.c.b16 %v324, %v323
    %v331 = vpack.c.b16 %v326, %v325
    %v332 = vpack.c.b16 %v328, %v327
    %v338 = vsel %vm257, %v213, 0
    %v341 = vsel %vm257, %v214, 0
    %343 = vmatprep.subr.bf16.mxu0 0
    %344 = vmatpush1.bf16.msra.mxu0 %v329
    %345 = vmatprep.subr.bf16.mxu0 0
    %346 = vmatpush1.bf16.msra.mxu0 %v330
    %347 = vmatprep.subr.bf16.mxu0 0
    %348 = vmatpush1.bf16.msra.mxu0 %v331
    %349 = vmatprep.subr.bf16.mxu0 0
    %350 = vmatpush1.bf16.msra.mxu0 %v332
    %351 = vmatprep.subr.bf16.mxu0 0
    %352 = vmatpush1.bf16.msra.mxu0 0
    %353 = vmatprep.subr.bf16.mxu0 0
    %354 = vmatpush1.bf16.msra.mxu0 0
    %355 = vmatprep.subr.bf16.mxu0 0
    %356 = vmatpush1.bf16.msra.mxu0 0
    %357 = vmatprep.subr.bf16.mxu0 0
    %358 = vmatpush1.bf16.msra.mxu0 0
    %359 = vmatprep.subr.bf16.mxu0 0
    %360 = vmatpush1.bf16.msra.mxu0 0
    %361 = vmatprep.subr.bf16.mxu0 0
    %362 = vmatpush1.bf16.msra.mxu0 0
    %363 = vmatprep.subr.bf16.mxu0 0
    %364 = vmatpush1.bf16.msra.mxu0 0
    %365 = vmatprep.subr.bf16.mxu0 0
    %366 = vmatpush1.bf16.msra.mxu0 0
    %367 = vmatprep.subr.bf16.mxu0 0
    %368 = vmatpush1.bf16.msra.mxu0 0
    %369 = vmatprep.subr.bf16.mxu0 0
    %370 = vmatpush1.bf16.msra.mxu0 0
    %371 = vmatprep.subr.bf16.mxu0 0
    %372 = vmatpush1.bf16.msra.mxu0 0
    %373 = vmatprep.subr.bf16.mxu0 0
    %374 = vmatpush1.bf16.msra.mxu0 0
    %375 = vmatprep.mubr.bf16.mxu0 0
    %376 = vmatmul.mubr.bf16.gmra.mrb[0].mxu0 %v338
    %v377 = vpop.f32.mrb[0].mxu0
    %v378 = vadd.f32 %v299, %v377
    %v379 = vpop.f32.mrb[0].mxu0
    %v380 = vpop.f32.mrb[0].mxu0
    %v381 = vadd.f32 %v302, %v380
    %v382 = vpop.f32.mrb[0].mxu0
    %383 = vmatprep.mubr.bf16.mxu0 0
    %384 = vmatmul.mubr.bf16.gmra.mrb[0].mxu0 %v341
    %v385 = vpop.f32.mrb[0].mxu0
    %v386 = vadd.f32 %v307, %v385
    %v387 = vpop.f32.mrb[0].mxu0
    %v388 = vpop.f32.mrb[0].mxu0
    %v389 = vadd.f32 %v310, %v388
    %v390 = vpop.f32.mrb[0].mxu0
    %391 = vdwg.mxu0
    %v392 = vpack.c.bf16 %v210, %v209
    %v393 = vpack.c.bf16 %v212, %v211
    %v394 = vld [vmem:[%s2 + $0x40] sm:$0xf]
    %v395 = vld [vmem:[%s2 + $0x44] sm:$0xf]
    %v396 = vld [vmem:[%s2 + $0x48] sm:$0xf]
    %v397 = vld [vmem:[%s2 + $0x4c] sm:$0xf]
    %v398 = vld [vmem:[%s2 + $0x50] sm:$0xf]
    %v399 = vld [vmem:[%s2 + $0x54] sm:$0xf]
    %v400 = vld [vmem:[%s2 + $0x58] sm:$0xf]
    %v401 = vld [vmem:[%s2 + $0x5c] sm:$0xf]
    %v410 = vunpack.c.l.b16 %v394
    %v411 = vunpack.c.l.b16 %v395
    %v412 = vunpack.c.l.b16 %v396
    %v413 = vunpack.c.l.b16 %v397
    %v414 = vunpack.c.l.b16 %v398
    %v415 = vunpack.c.l.b16 %v399
    %v416 = vunpack.c.l.b16 %v400
    %v417 = vunpack.c.l.b16 %v401
    %v418 = vpack.c.b16 %v411, %v410
    %v419 = vpack.c.b16 %v413, %v412
    %v420 = vpack.c.b16 %v415, %v414
    %v421 = vpack.c.b16 %v417, %v416
    %v427 = vsel %vm257, %v392, 0
    %v430 = vsel %vm257, %v393, 0
    %432 = vmatprep.subr.bf16.mxu0 0
    %433 = vmatpush1.bf16.msra.mxu0 %v418
    %434 = vmatprep.subr.bf16.mxu0 0
    %435 = vmatpush1.bf16.msra.mxu0 %v419
    %436 = vmatprep.subr.bf16.mxu0 0
    %437 = vmatpush1.bf16.msra.mxu0 %v420
    %438 = vmatprep.subr.bf16.mxu0 0
    %439 = vmatpush1.bf16.msra.mxu0 %v421
    %440 = vmatprep.subr.bf16.mxu0 0
    %441 = vmatpush1.bf16.msra.mxu0 0
    %442 = vmatprep.subr.bf16.mxu0 0
    %443 = vmatpush1.bf16.msra.mxu0 0
    %444 = vmatprep.subr.bf16.mxu0 0
    %445 = vmatpush1.bf16.msra.mxu0 0
    %446 = vmatprep.subr.bf16.mxu0 0
    %447 = vmatpush1.bf16.msra.mxu0 0
    %448 = vmatprep.subr.bf16.mxu0 0
    %449 = vmatpush1.bf16.msra.mxu0 0
    %450 = vmatprep.subr.bf16.mxu0 0
    %451 = vmatpush1.bf16.msra.mxu0 0
    %452 = vmatprep.subr.bf16.mxu0 0
    %453 = vmatpush1.bf16.msra.mxu0 0
    %454 = vmatprep.subr.bf16.mxu0 0
    %455 = vmatpush1.bf16.msra.mxu0 0
    %456 = vmatprep.subr.bf16.mxu0 0
    %457 = vmatpush1.bf16.msra.mxu0 0
    %458 = vmatprep.subr.bf16.mxu0 0
    %459 = vmatpush1.bf16.msra.mxu0 0
    %460 = vmatprep.subr.bf16.mxu0 0
    %461 = vmatpush1.bf16.msra.mxu0 0
    %462 = vmatprep.subr.bf16.mxu0 0
    %463 = vmatpush1.bf16.msra.mxu0 0
    %464 = vmatprep.mubr.bf16.mxu0 0
    %465 = vmatmul.mubr.bf16.gmra.mrb[0].mxu0 %v427
    %v466 = vpop.f32.mrb[0].mxu0
    %v467 = vadd.f32 0.0, %v466
    %v468 = vpop.f32.mrb[0].mxu0
    %v469 = vpop.f32.mrb[0].mxu0
    %v470 = vadd.f32 0.0, %v469
    %v471 = vpop.f32.mrb[0].mxu0
    %472 = vmatprep.mubr.bf16.mxu0 0
    %473 = vmatmul.mubr.bf16.gmra.mrb[0].mxu0 %v430
    %v474 = vpop.f32.mrb[0].mxu0
    %v475 = vadd.f32 0.0, %v474
    %v476 = vpop.f32.mrb[0].mxu0
    %v477 = vpop.f32.mrb[0].mxu0
    %v478 = vadd.f32 0.0, %v477
    %v479 = vpop.f32.mrb[0].mxu0
    %480 = vdwg.mxu0
    %v481 = vadd.f32 %v378, %v467
    %v482 = vadd.f32 %v381, %v470
    %v483 = vadd.f32 %v386, %v475
    %v484 = vadd.f32 %v389, %v478
    %v485 = vlaneseq
    %v486 = vshrl.u32 %v485, 7
    %v487 = vsub.s32 0, %v486
    %v488 = vrot.slane %v28, %v487
    %v489 = vmul.f32 %v481, %v488
    %v490 = vmul.f32 %v482, %v488
    %v491 = vmul.f32 %v483, %v488
    %v492 = vmul.f32 %v484, %v488
    %v493 = vlaneseq
    %v494 = vshrl.u32 %v493, 7
    %v495 = vsub.s32 0, %v494
    %v496 = vrot.slane %v29, %v495
    %v497 = vadd.f32 %v489, %v496
    %v498 = vadd.f32 %v490, %v496
    %v499 = vadd.f32 %v491, %v496
    %v500 = vadd.f32 %v492, %v496
    %v501 = vmax.f32 %v497, 0.0
    %v502 = vmax.f32 %v498, 0.0
    %v503 = vmax.f32 %v499, 0.0
    %v504 = vmax.f32 %v500, 0.0
    %v505 = vadd.f32 %v501, %v39
    %v506 = vadd.f32 %v502, %v40
    %v507 = vadd.f32 %v503, %v41
    %v508 = vadd.f32 %v504, %v42
    %v509 = vpack.c.bf16 %v506, %v505
    %v510 = vpack.c.bf16 %v508, %v507
    %v511 = vld [vmem:[%s3] sm:$0xf]
    %v512 = vld [vmem:[%s3 + $0x4] sm:$0xf]
    %v513 = vld [vmem:[%s3 + $0x8] sm:$0xf]
    %v514 = vld [vmem:[%s3 + $0xc] sm:$0xf]
    %v515 = vlaneseq
    %v516 = vshrl.u32 %v515, 7
    %v517 = vsub.s32 0, %v516
    %v518 = vrot.slane %v30, %v517
    %v523 = vunpack.c.l.b16 %v511
    %v524 = vunpack.c.l.b16 %v512
    %v525 = vunpack.c.l.b16 %v513
    %v526 = vunpack.c.l.b16 %v514
    %v527 = vpack.c.b16 %v524, %v523
    %v528 = vpack.c.b16 %v526, %v525
    %vm531 = vcmask 261120
    %v533 = vsel %vm531, %v509, 0
    %v536 = vsel %vm531, %v510, 0
    %538 = vmatprep.subr.bf16.mxu0 0
    %539 = vmatpush1.bf16.msra.mxu0 %v527
    %540 = vmatprep.subr.bf16.mxu0 0
    %541 = vmatpush1.bf16.msra.mxu0 %v528
    %542 = vmatprep.subr.bf16.mxu0 0
    %543 = vmatpush1.bf16.msra.mxu0 0
    %544 = vmatprep.subr.bf16.mxu0 0
    %545 = vmatpush1.bf16.msra.mxu0 0
    %546 = vmatprep.subr.bf16.mxu0 0
    %547 = vmatpush1.bf16.msra.mxu0 0
    %548 = vmatprep.subr.bf16.mxu0 0
    %549 = vmatpush1.bf16.msra.mxu0 0
    %550 = vmatprep.subr.bf16.mxu0 0
    %551 = vmatpush1.bf16.msra.mxu0 0
    %552 = vmatprep.subr.bf16.mxu0 0
    %553 = vmatpush1.bf16.msra.mxu0 0
    %554 = vmatprep.subr.bf16.mxu0 0
    %555 = vmatpush1.bf16.msra.mxu0 0
    %556 = vmatprep.subr.bf16.mxu0 0
    %557 = vmatpush1.bf16.msra.mxu0 0
    %558 = vmatprep.subr.bf16.mxu0 0
    %559 = vmatpush1.bf16.msra.mxu0 0
    %560 = vmatprep.subr.bf16.mxu0 0
    %561 = vmatpush1.bf16.msra.mxu0 0
    %562 = vmatprep.subr.bf16.mxu0 0
    %563 = vmatpush1.bf16.msra.mxu0 0
    %564 = vmatprep.subr.bf16.mxu0 0
    %565 = vmatpush1.bf16.msra.mxu0 0
    %566 = vmatprep.subr.bf16.mxu0 0
    %567 = vmatpush1.bf16.msra.mxu0 0
    %568 = vmatprep.subr.bf16.mxu0 0
    %569 = vmatpush1.bf16.msra.mxu0 0
    %570 = vmatprep.mubr.bf16.mxu0 0
    %571 = vmatmul.mubr.bf16.gmra.mrb[0].mxu0 %v533
    %v572 = vpop.f32.mrb[0].mxu0
    %v573 = vadd.f32 %v518, %v572
    %v574 = vpop.f32.mrb[0].mxu0
    %v575 = vpop.f32.mrb[0].mxu0
    %v576 = vadd.f32 %v518, %v575
    %v577 = vpop.f32.mrb[0].mxu0
    %578 = vmatprep.mubr.bf16.mxu0 0
    %579 = vmatmul.mubr.bf16.gmra.mrb[0].mxu0 %v536
    %v580 = vpop.f32.mrb[0].mxu0
    %v581 = vadd.f32 %v518, %v580
    %v582 = vpop.f32.mrb[0].mxu0
    %v583 = vpop.f32.mrb[0].mxu0
    %v584 = vadd.f32 %v518, %v583
    %v585 = vpop.f32.mrb[0].mxu0
    %586 = vdwg.mxu0
    %v587 = vpack.c.bf16 %v576, %v573
    %v588 = vpack.c.bf16 %v584, %v581
    %v589 = vld [vmem:[%s5 + $0xb] sm:$0x1]
    %v590 = vlaneseq
    %v591 = vshrl.u32 %v590, 7
    %v592 = vsub.s32 0, %v591
    %v593 = vrot.slane %v589, %v592
    %v594 = vmul.f32 %v573, %v593
    %v595 = vmul.f32 %v576, %v593
    %v596 = vmul.f32 %v581, %v593
    %v597 = vmul.f32 %v584, %v593
    %v598 = vpack.c.bf16 %v595, %v594
    %v599 = vpack.c.bf16 %v597, %v596
    %602 = vrot.lane.b32.xlu0 %v587, 96
    %v603 = vpop.permute.xlu0 %602
    %604 = vrot.lane.b32.xlu0 %v588, 96
    %v605 = vpop.permute.xlu0 %604
    %v607 = vsel %vm531, %v598, 0
    %v610 = vsel %vm531, %v599, 0
    %v613 = vsel %vm531, %v603, 0
    %v616 = vsel %vm531, %v605, 0
    %618 = vmatprep.subr.bf16.mxu0 0
    %619 = vmatpush1.bf16.xpose.msra.mxu0 %v613
    %620 = vmatprep.subr.bf16.mxu0 0
    %621 = vmatpush1.bf16.xpose.msra.mxu0 %v616
    %622 = vmatprep.subr.bf16.mxu0 0
    %623 = vmatpush1.bf16.xpose.msra.mxu0 0
    %624 = vmatprep.subr.bf16.mxu0 0
    %625 = vmatpush1.bf16.xpose.msra.mxu0 0
    %626 = vmatprep.subr.bf16.mxu0 0
    %627 = vmatpush1.bf16.xpose.msra.mxu0 0
    %628 = vmatprep.subr.bf16.mxu0 0
    %629 = vmatpush1.bf16.xpose.msra.mxu0 0
    %630 = vmatprep.subr.bf16.mxu0 0
    %631 = vmatpush1.bf16.xpose.msra.mxu0 0
    %632 = vmatprep.subr.bf16.mxu0 0
    %633 = vmatpush1.bf16.xpose.msra.mxu0 0
    %634 = vmatprep.subr.bf16.mxu0 0
    %635 = vmatpush1.bf16.xpose.msra.mxu0 0
    %636 = vmatprep.subr.bf16.mxu0 0
    %637 = vmatpush1.bf16.xpose.msra.mxu0 0
    %638 = vmatprep.subr.bf16.mxu0 0
    %639 = vmatpush1.bf16.xpose.msra.mxu0 0
    %640 = vmatprep.subr.bf16.mxu0 0
    %641 = vmatpush1.bf16.xpose.msra.mxu0 0
    %642 = vmatprep.subr.bf16.mxu0 0
    %643 = vmatpush1.bf16.xpose.msra.mxu0 0
    %644 = vmatprep.subr.bf16.mxu0 0
    %645 = vmatpush1.bf16.xpose.msra.mxu0 0
    %646 = vmatprep.subr.bf16.mxu0 0
    %647 = vmatpush1.bf16.xpose.msra.mxu0 0
    %648 = vmatprep.subr.bf16.mxu0 0
    %649 = vmatpush1.bf16.xpose.msra.mxu0 0
    %650 = vmatprep.mubr.bf16.mxu0 0
    %651 = vmatmul.mubr.bf16.gmra.mrb[0].mxu0 %v607
    %v652 = vpop.f32.mrb[0].mxu0
    %v653 = vadd.f32 0.0, %v652
    %v654 = vpop.f32.mrb[0].mxu0
    %v655 = vpop.f32.mrb[0].mxu0
    %v656 = vadd.f32 0.0, %v655
    %v657 = vpop.f32.mrb[0].mxu0
    %658 = vmatprep.mubr.bf16.mxu0 0
    %659 = vmatmul.mubr.bf16.gmra.mrb[0].mxu0 %v610
    %v660 = vpop.f32.mrb[0].mxu0
    %v661 = vadd.f32 0.0, %v660
    %v662 = vpop.f32.mrb[0].mxu0
    %v663 = vpop.f32.mrb[0].mxu0
    %v664 = vadd.f32 0.0, %v663
    %v665 = vpop.f32.mrb[0].mxu0
    %666 = vdwg.mxu0
    %v667 = vmul.f32 %v653, 0.35355338
    %v668 = vmul.f32 %v656, 0.35355338
    %v669 = vmul.f32 %v661, 0.35355338
    %v670 = vmul.f32 %v664, 0.35355338
    %671 = vrot.lane.b32.xlu0 %v39, 96
    %v672 = vpop.permute.xlu0 %671
    %673 = vrot.lane.b32.xlu0 %v40, 96
    %v674 = vpop.permute.xlu0 %673
    %675 = vrot.lane.b32.xlu0 %v41, 96
    %v676 = vpop.permute.xlu0 %675
    %677 = vrot.lane.b32.xlu0 %v42, 96
    %v678 = vpop.permute.xlu0 %677
    %v683 = vadd.f32 %v667, %v672
    %v684 = vadd.f32 %v668, %v674
    %v685 = vadd.f32 %v669, %v676
    %v686 = vadd.f32 %v670, %v678
    %v687 = vsel %vm531, %v683, -inf
    %688 = vmax.xlane.f32.xlu0 %v687
    %v689 = vpop.xlane.xlu0 %688
    %v690 = vsel %vm531, %v684, -inf
    %691 = vmax.xlane.f32.xlu0 %v690
    %v692 = vpop.xlane.xlu0 %691
    %v693 = vsel %vm531, %v685, -inf
    %694 = vmax.xlane.f32.xlu0 %v693
    %v695 = vpop.xlane.xlu0 %694
    %v696 = vsel %vm531, %v686, -inf
    %697 = vmax.xlane.f32.xlu0 %v696
    %v698 = vpop.xlane.xlu0 %697
    %v699 = vsub.f32 %v683, %v689
    %v700 = vsub.f32 %v684, %v692
    %v701 = vsub.f32 %v685, %v695
    %v702 = vsub.f32 %v686, %v698
    %v703 = vmul.f32 %v699, 1.442695
    %v704 = vpow.pop %v703
    %v705 = vmul.f32 %v700, 1.442695
    %v706 = vpow.pop %v705
    %v707 = vmul.f32 %v701, 1.442695
    %v708 = vpow.pop %v707
    %v709 = vmul.f32 %v702, 1.442695
    %v710 = vpow.pop %v709
    %v711 = vsel %vm531, %v704, 0.0
    %712 = vadd.xlane.f32.xlu0 %v711
    %v713 = vpop.xlane.xlu0 %712
    %v714 = vsel %vm531, %v706, 0.0
    %715 = vadd.xlane.f32.xlu0 %v714
    %v716 = vpop.xlane.xlu0 %715
    %v717 = vsel %vm531, %v708, 0.0
    %718 = vadd.xlane.f32.xlu0 %v717
    %v719 = vpop.xlane.xlu0 %718
    %v720 = vsel %vm531, %v710, 0.0
    %721 = vadd.xlane.f32.xlu0 %v720
    %v722 = vpop.xlane.xlu0 %721
    %v723 = vrcp.pop %v713
    %v724 = vrcp.pop %v716
    %v725 = vrcp.pop %v719
    %v726 = vrcp.pop %v722
    %v727 = vmul.f32 %v704, %v723
    %v728 = vmul.f32 %v706, %v724
    %v729 = vmul.f32 %v708, %v725
    %v730 = vmul.f32 %v710, %v726
    %v731 = vpack.c.bf16 %v728, %v727
    %v732 = vpack.c.bf16 %v730, %v729
    %734 = vrot.lane.b32.xlu0 %v593, 64
    %v735 = vpop.permute.xlu0 %734
    %v737 = vmul.f32 %v573, %v735
    %v738 = vmul.f32 %v576, %v735
    %v739 = vmul.f32 %v581, %v735
    %v740 = vmul.f32 %v584, %v735
    %v741 = vpack.c.bf16 %v738, %v737
    %v742 = vpack.c.bf16 %v740, %v739
    %v743 = vld [vmem:[%s5 + $0xc] sm:$0x1]
    %v744 = vlaneseq
    %v745 = vshrl.u32 %v744, 7
    %v746 = vsub.s32 0, %v745
    %v747 = vrot.slane %v743, %v746
    %v748 = vmul.f32 %v573, %v747
    %v749 = vmul.f32 %v576, %v747
    %v750 = vmul.f32 %v581, %v747
    %v751 = vmul.f32 %v584, %v747
    %v752 = vpack.c.bf16 %v749, %v748
    %v753 = vpack.c.bf16 %v751, %v750
    %v755 = vsel %vm531, %v752, 0
    %v758 = vsel %vm531, %v753, 0
    %760 = vmatprep.subr.bf16.mxu0 0
    %761 = vmatpush1.bf16.xpose.msra.mxu0 %v613
    %762 = vmatprep.subr.bf16.mxu0 0
    %763 = vmatpush1.bf16.xpose.msra.mxu0 %v616
    %764 = vmatprep.subr.bf16.mxu0 0
    %765 = vmatpush1.bf16.xpose.msra.mxu0 0
    %766 = vmatprep.subr.bf16.mxu0 0
    %767 = vmatpush1.bf16.xpose.msra.mxu0 0
    %768 = vmatprep.subr.bf16.mxu0 0
    %769 = vmatpush1.bf16.xpose.msra.mxu0 0
    %770 = vmatprep.subr.bf16.mxu0 0
    %771 = vmatpush1.bf16.xpose.msra.mxu0 0
    %772 = vmatprep.subr.bf16.mxu0 0
    %773 = vmatpush1.bf16.xpose.msra.mxu0 0
    %774 = vmatprep.subr.bf16.mxu0 0
    %775 = vmatpush1.bf16.xpose.msra.mxu0 0
    %776 = vmatprep.subr.bf16.mxu0 0
    %777 = vmatpush1.bf16.xpose.msra.mxu0 0
    %778 = vmatprep.subr.bf16.mxu0 0
    %779 = vmatpush1.bf16.xpose.msra.mxu0 0
    %780 = vmatprep.subr.bf16.mxu0 0
    %781 = vmatpush1.bf16.xpose.msra.mxu0 0
    %782 = vmatprep.subr.bf16.mxu0 0
    %783 = vmatpush1.bf16.xpose.msra.mxu0 0
    %784 = vmatprep.subr.bf16.mxu0 0
    %785 = vmatpush1.bf16.xpose.msra.mxu0 0
    %786 = vmatprep.subr.bf16.mxu0 0
    %787 = vmatpush1.bf16.xpose.msra.mxu0 0
    %788 = vmatprep.subr.bf16.mxu0 0
    %789 = vmatpush1.bf16.xpose.msra.mxu0 0
    %790 = vmatprep.subr.bf16.mxu0 0
    %791 = vmatpush1.bf16.xpose.msra.mxu0 0
    %792 = vmatprep.mubr.bf16.mxu0 0
    %793 = vmatmul.mubr.bf16.gmra.mrb[0].mxu0 %v755
    %v794 = vpop.f32.mrb[0].mxu0
    %v795 = vadd.f32 0.0, %v794
    %v796 = vpop.f32.mrb[0].mxu0
    %v797 = vpop.f32.mrb[0].mxu0
    %v798 = vadd.f32 0.0, %v797
    %v799 = vpop.f32.mrb[0].mxu0
    %800 = vmatprep.mubr.bf16.mxu0 0
    %801 = vmatmul.mubr.bf16.gmra.mrb[0].mxu0 %v758
    %v802 = vpop.f32.mrb[0].mxu0
    %v803 = vadd.f32 0.0, %v802
    %v804 = vpop.f32.mrb[0].mxu0
    %v805 = vpop.f32.mrb[0].mxu0
    %v806 = vadd.f32 0.0, %v805
    %v807 = vpop.f32.mrb[0].mxu0
    %808 = vdwg.mxu0
    %v809 = vmul.f32 %v795, 0.35355338
    %v810 = vmul.f32 %v798, 0.35355338
    %v811 = vmul.f32 %v803, 0.35355338
    %v812 = vmul.f32 %v806, 0.35355338
    %v813 = vadd.f32 %v809, %v672
    %v814 = vadd.f32 %v810, %v674
    %v815 = vadd.f32 %v811, %v676
    %v816 = vadd.f32 %v812, %v678
    %v817 = vsel %vm531, %v813, -inf
    %818 = vmax.xlane.f32.xlu0 %v817
    %v819 = vpop.xlane.xlu0 %818
    %v820 = vsel %vm531, %v814, -inf
    %821 = vmax.xlane.f32.xlu0 %v820
    %v822 = vpop.xlane.xlu0 %821
    %v823 = vsel %vm531, %v815, -inf
    %824 = vmax.xlane.f32.xlu0 %v823
    %v825 = vpop.xlane.xlu0 %824
    %v826 = vsel %vm531, %v816, -inf
    %827 = vmax.xlane.f32.xlu0 %v826
    %v828 = vpop.xlane.xlu0 %827
    %v829 = vsub.f32 %v813, %v819
    %v830 = vsub.f32 %v814, %v822
    %v831 = vsub.f32 %v815, %v825
    %v832 = vsub.f32 %v816, %v828
    %v833 = vmul.f32 %v829, 1.442695
    %v834 = vpow.pop %v833
    %v835 = vmul.f32 %v830, 1.442695
    %v836 = vpow.pop %v835
    %v837 = vmul.f32 %v831, 1.442695
    %v838 = vpow.pop %v837
    %v839 = vmul.f32 %v832, 1.442695
    %v840 = vpow.pop %v839
    %v841 = vsel %vm531, %v834, 0.0
    %842 = vadd.xlane.f32.xlu0 %v841
    %v843 = vpop.xlane.xlu0 %842
    %v844 = vsel %vm531, %v836, 0.0
    %845 = vadd.xlane.f32.xlu0 %v844
    %v846 = vpop.xlane.xlu0 %845
    %v847 = vsel %vm531, %v838, 0.0
    %848 = vadd.xlane.f32.xlu0 %v847
    %v849 = vpop.xlane.xlu0 %848
    %v850 = vsel %vm531, %v840, 0.0
    %851 = vadd.xlane.f32.xlu0 %v850
    %v852 = vpop.xlane.xlu0 %851
    %v853 = vrcp.pop %v843
    %v854 = vrcp.pop %v846
    %v855 = vrcp.pop %v849
    %v856 = vrcp.pop %v852
    %v857 = vmul.f32 %v834, %v853
    %v858 = vmul.f32 %v836, %v854
    %v859 = vmul.f32 %v838, %v855
    %v860 = vmul.f32 %v840, %v856
    %v861 = vpack.c.bf16 %v858, %v857
    %v862 = vpack.c.bf16 %v860, %v859
    %864 = vrot.lane.b32.xlu0 %v747, 64
    %v865 = vpop.permute.xlu0 %864
    %v867 = vmul.f32 %v573, %v865
    %v868 = vmul.f32 %v576, %v865
    %v869 = vmul.f32 %v581, %v865
    %v870 = vmul.f32 %v584, %v865
    %v871 = vpack.c.bf16 %v868, %v867
    %v872 = vpack.c.bf16 %v870, %v869
    %875 = vrot.lane.b32.xlu0 %v871, 64
    %v876 = vpop.permute.xlu0 %875
    %877 = vrot.lane.b32.xlu0 %v872, 64
    %v878 = vpop.permute.xlu0 %877
    %v882 = vsel %vm531, %v861, 0
    %v885 = vsel %vm531, %v862, 0
    %887 = vmatprep.subr.bf16.mxu0 0
    %888 = vmatpush1.bf16.msra.mxu0 %v876
    %889 = vmatprep.subr.bf16.mxu0 0
    %890 = vmatpush1.bf16.msra.mxu0 %v878
    %891 = vmatprep.subr.bf16.mxu0 0
    %892 = vmatpush1.bf16.msra.mxu0 0
    %893 = vmatprep.subr.bf16.mxu0 0
    %894 = vmatpush1.bf16.msra.mxu0 0
    %895 = vmatprep.subr.bf16.mxu0 0
    %896 = vmatpush1.bf16.msra.mxu0 0
    %897 = vmatprep.subr.bf16.mxu0 0
    %898 = vmatpush1.bf16.msra.mxu0 0
    %899 = vmatprep.subr.bf16.mxu0 0
    %900 = vmatpush1.bf16.msra.mxu0 0
    %901 = vmatprep.subr.bf16.mxu0 0
    %902 = vmatpush1.bf16.msra.mxu0 0
    %903 = vmatprep.subr.bf16.mxu0 0
    %904 = vmatpush1.bf16.msra.mxu0 0
    %905 = vmatprep.subr.bf16.mxu0 0
    %906 = vmatpush1.bf16.msra.mxu0 0
    %907 = vmatprep.subr.bf16.mxu0 0
    %908 = vmatpush1.bf16.msra.mxu0 0
    %909 = vmatprep.subr.bf16.mxu0 0
    %910 = vmatpush1.bf16.msra.mxu0 0
    %911 = vmatprep.subr.bf16.mxu0 0
    %912 = vmatpush1.bf16.msra.mxu0 0
    %913 = vmatprep.subr.bf16.mxu0 0
    %914 = vmatpush1.bf16.msra.mxu0 0
    %915 = vmatprep.subr.bf16.mxu0 0
    %916 = vmatpush1.bf16.msra.mxu0 0
    %917 = vmatprep.subr.bf16.mxu0 0
    %918 = vmatpush1.bf16.msra.mxu0 0
    %919 = vmatprep.mubr.bf16.mxu0 0
    %920 = vmatmul.mubr.bf16.gmra.mrb[0].mxu0 %v882
    %v921 = vpop.f32.mrb[0].mxu0
    %v922 = vadd.f32 0.0, %v921
    %v923 = vpop.f32.mrb[0].mxu0
    %v924 = vpop.f32.mrb[0].mxu0
    %v925 = vadd.f32 0.0, %v924
    %v926 = vpop.f32.mrb[0].mxu0
    %927 = vmatprep.mubr.bf16.mxu0 0
    %928 = vmatmul.mubr.bf16.gmra.mrb[0].mxu0 %v885
    %v929 = vpop.f32.mrb[0].mxu0
    %v930 = vadd.f32 0.0, %v929
    %v931 = vpop.f32.mrb[0].mxu0
    %v932 = vpop.f32.mrb[0].mxu0
    %v933 = vadd.f32 0.0, %v932
    %v934 = vpop.f32.mrb[0].mxu0
    %935 = vdwg.mxu0
    %938 = vrot.lane.b32.xlu0 %v741, 64
    %v939 = vpop.permute.xlu0 %938
    %940 = vrot.lane.b32.xlu0 %v742, 64
    %v941 = vpop.permute.xlu0 %940
    %v945 = vsel %vm531, %v731, 0
    %v948 = vsel %vm531, %v732, 0
    %950 = vmatprep.subr.bf16.mxu0 0
    %951 = vmatpush1.bf16.msra.mxu0 %v939
    %952 = vmatprep.subr.bf16.mxu0 0
    %953 = vmatpush1.bf16.msra.mxu0 %v941
    %954 = vmatprep.subr.bf16.mxu0 0
    %955 = vmatpush1.bf16.msra.mxu0 0
    %956 = vmatprep.subr.bf16.mxu0 0
    %957 = vmatpush1.bf16.msra.mxu0 0
    %958 = vmatprep.subr.bf16.mxu0 0
    %959 = vmatpush1.bf16.msra.mxu0 0
    %960 = vmatprep.subr.bf16.mxu0 0
    %961 = vmatpush1.bf16.msra.mxu0 0
    %962 = vmatprep.subr.bf16.mxu0 0
    %963 = vmatpush1.bf16.msra.mxu0 0
    %964 = vmatprep.subr.bf16.mxu0 0
    %965 = vmatpush1.bf16.msra.mxu0 0
    %966 = vmatprep.subr.bf16.mxu0 0
    %967 = vmatpush1.bf16.msra.mxu0 0
    %968 = vmatprep.subr.bf16.mxu0 0
    %969 = vmatpush1.bf16.msra.mxu0 0
    %970 = vmatprep.subr.bf16.mxu0 0
    %971 = vmatpush1.bf16.msra.mxu0 0
    %972 = vmatprep.subr.bf16.mxu0 0
    %973 = vmatpush1.bf16.msra.mxu0 0
    %974 = vmatprep.subr.bf16.mxu0 0
    %975 = vmatpush1.bf16.msra.mxu0 0
    %976 = vmatprep.subr.bf16.mxu0 0
    %977 = vmatpush1.bf16.msra.mxu0 0
    %978 = vmatprep.subr.bf16.mxu0 0
    %979 = vmatpush1.bf16.msra.mxu0 0
    %980 = vmatprep.subr.bf16.mxu0 0
    %981 = vmatpush1.bf16.msra.mxu0 0
    %982 = vmatprep.mubr.bf16.mxu0 0
    %983 = vmatmul.mubr.bf16.gmra.mrb[0].mxu0 %v945
    %v984 = vpop.f32.mrb[0].mxu0
    %v985 = vadd.f32 %v922, %v984
    %v986 = vpop.f32.mrb[0].mxu0
    %v987 = vpop.f32.mrb[0].mxu0
    %v988 = vadd.f32 %v925, %v987
    %v989 = vpop.f32.mrb[0].mxu0
    %990 = vmatprep.mubr.bf16.mxu0 0
    %991 = vmatmul.mubr.bf16.gmra.mrb[0].mxu0 %v948
    %v992 = vpop.f32.mrb[0].mxu0
    %v993 = vadd.f32 %v930, %v992
    %v994 = vpop.f32.mrb[0].mxu0
    %v995 = vpop.f32.mrb[0].mxu0
    %v996 = vadd.f32 %v933, %v995
    %v997 = vpop.f32.mrb[0].mxu0
    %998 = vdwg.mxu0
    %v999 = vld [vmem:[%s5 + $0xd] sm:$0x1]
    %v1000 = vlaneseq
    %v1001 = vshrl.u32 %v1000, 7
    %v1002 = vsub.s32 0, %v1001
    %v1003 = vrot.slane %v999, %v1002
    %v1004 = vmul.f32 %v573, %v1003
    %v1005 = vmul.f32 %v576, %v1003
    %v1006 = vmul.f32 %v581, %v1003
    %v1007 = vmul.f32 %v584, %v1003
    %v1008 = vpack.c.bf16 %v1005, %v1004
    %v1009 = vpack.c.bf16 %v1007, %v1006
    %v1011 = vsel %vm531, %v1008, 0
    %v1014 = vsel %vm531, %v1009, 0
    %1016 = vmatprep.subr.bf16.mxu0 0
    %1017 = vmatpush1.bf16.xpose.msra.mxu0 %v613
    %1018 = vmatprep.subr.bf16.mxu0 0
    %1019 = vmatpush1.bf16.xpose.msra.mxu0 %v616
    %1020 = vmatprep.subr.bf16.mxu0 0
    %1021 = vmatpush1.bf16.xpose.msra.mxu0 0
    %1022 = vmatprep.subr.bf16.mxu0 0
    %1023 = vmatpush1.bf16.xpose.msra.mxu0 0
    %1024 = vmatprep.subr.bf16.mxu0 0
    %1025 = vmatpush1.bf16.xpose.msra.mxu0 0
    %1026 = vmatprep.subr.bf16.mxu0 0
    %1027 = vmatpush1.bf16.xpose.msra.mxu0 0
    %1028 = vmatprep.subr.bf16.mxu0 0
    %1029 = vmatpush1.bf16.xpose.msra.mxu0 0
    %1030 = vmatprep.subr.bf16.mxu0 0
    %1031 = vmatpush1.bf16.xpose.msra.mxu0 0
    %1032 = vmatprep.subr.bf16.mxu0 0
    %1033 = vmatpush1.bf16.xpose.msra.mxu0 0
    %1034 = vmatprep.subr.bf16.mxu0 0
    %1035 = vmatpush1.bf16.xpose.msra.mxu0 0
    %1036 = vmatprep.subr.bf16.mxu0 0
    %1037 = vmatpush1.bf16.xpose.msra.mxu0 0
    %1038 = vmatprep.subr.bf16.mxu0 0
    %1039 = vmatpush1.bf16.xpose.msra.mxu0 0
    %1040 = vmatprep.subr.bf16.mxu0 0
    %1041 = vmatpush1.bf16.xpose.msra.mxu0 0
    %1042 = vmatprep.subr.bf16.mxu0 0
    %1043 = vmatpush1.bf16.xpose.msra.mxu0 0
    %1044 = vmatprep.subr.bf16.mxu0 0
    %1045 = vmatpush1.bf16.xpose.msra.mxu0 0
    %1046 = vmatprep.subr.bf16.mxu0 0
    %1047 = vmatpush1.bf16.xpose.msra.mxu0 0
    %1048 = vmatprep.mubr.bf16.mxu0 0
    %1049 = vmatmul.mubr.bf16.gmra.mrb[0].mxu0 %v1011
    %v1050 = vpop.f32.mrb[0].mxu0
    %v1051 = vadd.f32 0.0, %v1050
    %v1052 = vpop.f32.mrb[0].mxu0
    %v1053 = vpop.f32.mrb[0].mxu0
    %v1054 = vadd.f32 0.0, %v1053
    %v1055 = vpop.f32.mrb[0].mxu0
    %1056 = vmatprep.mubr.bf16.mxu0 0
    %1057 = vmatmul.mubr.bf16.gmra.mrb[0].mxu0 %v1014
    %v1058 = vpop.f32.mrb[0].mxu0
    %v1059 = vadd.f32 0.0, %v1058
    %v1060 = vpop.f32.mrb[0].mxu0
    %v1061 = vpop.f32.mrb[0].mxu0
    %v1062 = vadd.f32 0.0, %v1061
    %v1063 = vpop.f32.mrb[0].mxu0
    %1064 = vdwg.mxu0
    %v1065 = vmul.f32 %v1051, 0.35355338
    %v1066 = vmul.f32 %v1054, 0.35355338
    %v1067 = vmul.f32 %v1059, 0.35355338
    %v1068 = vmul.f32 %v1062, 0.35355338
    %v1069 = vadd.f32 %v1065, %v672
    %v1070 = vadd.f32 %v1066, %v674
    %v1071 = vadd.f32 %v1067, %v676
    %v1072 = vadd.f32 %v1068, %v678
    %v1073 = vsel %vm531, %v1069, -inf
    %1074 = vmax.xlane.f32.xlu0 %v1073
    %v1075 = vpop.xlane.xlu0 %1074
    %v1076 = vsel %vm531, %v1070, -inf
    %1077 = vmax.xlane.f32.xlu0 %v1076
    %v1078 = vpop.xlane.xlu0 %1077
    %v1079 = vsel %vm531, %v1071, -inf
    %1080 = vmax.xlane.f32.xlu0 %v1079
    %v1081 = vpop.xlane.xlu0 %1080
    %v1082 = vsel %vm531, %v1072, -inf
    %1083 = vmax.xlane.f32.xlu0 %v1082
    %v1084 = vpop.xlane.xlu0 %1083
    %v1085 = vsub.f32 %v1069, %v1075
    %v1086 = vsub.f32 %v1070, %v1078
    %v1087 = vsub.f32 %v1071, %v1081
    %v1088 = vsub.f32 %v1072, %v1084
    %v1089 = vmul.f32 %v1085, 1.442695
    %v1090 = vpow.pop %v1089
    %v1091 = vmul.f32 %v1086, 1.442695
    %v1092 = vpow.pop %v1091
    %v1093 = vmul.f32 %v1087, 1.442695
    %v1094 = vpow.pop %v1093
    %v1095 = vmul.f32 %v1088, 1.442695
    %v1096 = vpow.pop %v1095
    %v1097 = vsel %vm531, %v1090, 0.0
    %1098 = vadd.xlane.f32.xlu0 %v1097
    %v1099 = vpop.xlane.xlu0 %1098
    %v1100 = vsel %vm531, %v1092, 0.0
    %1101 = vadd.xlane.f32.xlu0 %v1100
    %v1102 = vpop.xlane.xlu0 %1101
    %v1103 = vsel %vm531, %v1094, 0.0
    %1104 = vadd.xlane.f32.xlu0 %v1103
    %v1105 = vpop.xlane.xlu0 %1104
    %v1106 = vsel %vm531, %v1096, 0.0
    %1107 = vadd.xlane.f32.xlu0 %v1106
    %v1108 = vpop.xlane.xlu0 %1107
    %v1109 = vrcp.pop %v1099
    %v1110 = vrcp.pop %v1102
    %v1111 = vrcp.pop %v1105
    %v1112 = vrcp.pop %v1108
    %v1113 = vmul.f32 %v1090, %v1109
    %v1114 = vmul.f32 %v1092, %v1110
    %v1115 = vmul.f32 %v1094, %v1111
    %v1116 = vmul.f32 %v1096, %v1112
    %v1117 = vpack.c.bf16 %v1114, %v1113
    %v1118 = vpack.c.bf16 %v1116, %v1115
    %1120 = vrot.lane.b32.xlu0 %v1003, 64
    %v1121 = vpop.permute.xlu0 %1120
    %v1123 = vmul.f32 %v573, %v1121
    %v1124 = vmul.f32 %v576, %v1121
    %v1125 = vmul.f32 %v581, %v1121
    %v1126 = vmul.f32 %v584, %v1121
    %v1127 = vpack.c.bf16 %v1124, %v1123
    %v1128 = vpack.c.bf16 %v1126, %v1125
    %1131 = vrot.lane.b32.xlu0 %v1127, 64
    %v1132 = vpop.permute.xlu0 %1131
    %1133 = vrot.lane.b32.xlu0 %v1128, 64
    %v1134 = vpop.permute.xlu0 %1133
    %v1138 = vsel %vm531, %v1117, 0
    %v1141 = vsel %vm531, %v1118, 0
    %1143 = vmatprep.subr.bf16.mxu0 0
    %1144 = vmatpush1.bf16.msra.mxu0 %v1132
    %1145 = vmatprep.subr.bf16.mxu0 0
    %1146 = vmatpush1.bf16.msra.mxu0 %v1134
    %1147 = vmatprep.subr.bf16.mxu0 0
    %1148 = vmatpush1.bf16.msra.mxu0 0
    %1149 = vmatprep.subr.bf16.mxu0 0
    %1150 = vmatpush1.bf16.msra.mxu0 0
    %1151 = vmatprep.subr.bf16.mxu0 0
    %1152 = vmatpush1.bf16.msra.mxu0 0
    %1153 = vmatprep.subr.bf16.mxu0 0
    %1154 = vmatpush1.bf16.msra.mxu0 0
    %1155 = vmatprep.subr.bf16.mxu0 0
    %1156 = vmatpush1.bf16.msra.mxu0 0
    %1157 = vmatprep.subr.bf16.mxu0 0
    %1158 = vmatpush1.bf16.msra.mxu0 0
    %1159 = vmatprep.subr.bf16.mxu0 0
    %1160 = vmatpush1.bf16.msra.mxu0 0
    %1161 = vmatprep.subr.bf16.mxu0 0
    %1162 = vmatpush1.bf16.msra.mxu0 0
    %1163 = vmatprep.subr.bf16.mxu0 0
    %1164 = vmatpush1.bf16.msra.mxu0 0
    %1165 = vmatprep.subr.bf16.mxu0 0
    %1166 = vmatpush1.bf16.msra.mxu0 0
    %1167 = vmatprep.subr.bf16.mxu0 0
    %1168 = vmatpush1.bf16.msra.mxu0 0
    %1169 = vmatprep.subr.bf16.mxu0 0
    %1170 = vmatpush1.bf16.msra.mxu0 0
    %1171 = vmatprep.subr.bf16.mxu0 0
    %1172 = vmatpush1.bf16.msra.mxu0 0
    %1173 = vmatprep.subr.bf16.mxu0 0
    %1174 = vmatpush1.bf16.msra.mxu0 0
    %1175 = vmatprep.mubr.bf16.mxu0 0
    %1176 = vmatmul.mubr.bf16.gmra.mrb[0].mxu0 %v1138
    %v1177 = vpop.f32.mrb[0].mxu0
    %v1178 = vadd.f32 0.0, %v1177
    %v1179 = vpop.f32.mrb[0].mxu0
    %v1180 = vpop.f32.mrb[0].mxu0
    %v1181 = vadd.f32 0.0, %v1180
    %v1182 = vpop.f32.mrb[0].mxu0
    %1183 = vmatprep.mubr.bf16.mxu0 0
    %1184 = vmatmul.mubr.bf16.gmra.mrb[0].mxu0 %v1141
    %v1185 = vpop.f32.mrb[0].mxu0
    %v1186 = vadd.f32 0.0, %v1185
    %v1187 = vpop.f32.mrb[0].mxu0
    %v1188 = vpop.f32.mrb[0].mxu0
    %v1189 = vadd.f32 0.0, %v1188
    %v1190 = vpop.f32.mrb[0].mxu0
    %1191 = vdwg.mxu0
    %v1192 = vadd.f32 %v985, %v1178
    %v1193 = vadd.f32 %v988, %v1181
    %v1194 = vadd.f32 %v993, %v1186
    %v1195 = vadd.f32 %v996, %v1189
    %v1196 = vld [vmem:[%s5 + $0xe] sm:$0x1]
    %v1197 = vlaneseq
    %v1198 = vshrl.u32 %v1197, 7
    %v1199 = vsub.s32 0, %v1198
    %v1200 = vrot.slane %v1196, %v1199
    %v1201 = vmul.f32 %v573, %v1200
    %v1202 = vmul.f32 %v576, %v1200
    %v1203 = vmul.f32 %v581, %v1200
    %v1204 = vmul.f32 %v584, %v1200
    %v1205 = vpack.c.bf16 %v1202, %v1201
    %v1206 = vpack.c.bf16 %v1204, %v1203
    %v1208 = vsel %vm531, %v1205, 0
    %v1211 = vsel %vm531, %v1206, 0
    %1213 = vmatprep.subr.bf16.mxu0 0
    %1214 = vmatpush1.bf16.xpose.msra.mxu0 %v613
    %1215 = vmatprep.subr.bf16.mxu0 0
    %1216 = vmatpush1.bf16.xpose.msra.mxu0 %v616
    %1217 = vmatprep.subr.bf16.mxu0 0
    %1218 = vmatpush1.bf16.xpose.msra.mxu0 0
    %1219 = vmatprep.subr.bf16.mxu0 0
    %1220 = vmatpush1.bf16.xpose.msra.mxu0 0
    %1221 = vmatprep.subr.bf16.mxu0 0
    %1222 = vmatpush1.bf16.xpose.msra.mxu0 0
    %1223 = vmatprep.subr.bf16.mxu0 0
    %1224 = vmatpush1.bf16.xpose.msra.mxu0 0
    %1225 = vmatprep.subr.bf16.mxu0 0
    %1226 = vmatpush1.bf16.xpose.msra.mxu0 0
    %1227 = vmatprep.subr.bf16.mxu0 0
    %1228 = vmatpush1.bf16.xpose.msra.mxu0 0
    %1229 = vmatprep.subr.bf16.mxu0 0
    %1230 = vmatpush1.bf16.xpose.msra.mxu0 0
    %1231 = vmatprep.subr.bf16.mxu0 0
    %1232 = vmatpush1.bf16.xpose.msra.mxu0 0
    %1233 = vmatprep.subr.bf16.mxu0 0
    %1234 = vmatpush1.bf16.xpose.msra.mxu0 0
    %1235 = vmatprep.subr.bf16.mxu0 0
    %1236 = vmatpush1.bf16.xpose.msra.mxu0 0
    %1237 = vmatprep.subr.bf16.mxu0 0
    %1238 = vmatpush1.bf16.xpose.msra.mxu0 0
    %1239 = vmatprep.subr.bf16.mxu0 0
    %1240 = vmatpush1.bf16.xpose.msra.mxu0 0
    %1241 = vmatprep.subr.bf16.mxu0 0
    %1242 = vmatpush1.bf16.xpose.msra.mxu0 0
    %1243 = vmatprep.subr.bf16.mxu0 0
    %1244 = vmatpush1.bf16.xpose.msra.mxu0 0
    %1245 = vmatprep.mubr.bf16.mxu0 0
    %1246 = vmatmul.mubr.bf16.gmra.mrb[0].mxu0 %v1208
    %v1247 = vpop.f32.mrb[0].mxu0
    %v1248 = vadd.f32 0.0, %v1247
    %v1249 = vpop.f32.mrb[0].mxu0
    %v1250 = vpop.f32.mrb[0].mxu0
    %v1251 = vadd.f32 0.0, %v1250
    %v1252 = vpop.f32.mrb[0].mxu0
    %1253 = vmatprep.mubr.bf16.mxu0 0
    %1254 = vmatmul.mubr.bf16.gmra.mrb[0].mxu0 %v1211
    %v1255 = vpop.f32.mrb[0].mxu0
    %v1256 = vadd.f32 0.0, %v1255
    %v1257 = vpop.f32.mrb[0].mxu0
    %v1258 = vpop.f32.mrb[0].mxu0
    %v1259 = vadd.f32 0.0, %v1258
    %v1260 = vpop.f32.mrb[0].mxu0
    %1261 = vdwg.mxu0
    %v1262 = vmul.f32 %v1248, 0.35355338
    %v1263 = vmul.f32 %v1251, 0.35355338
    %v1264 = vmul.f32 %v1256, 0.35355338
    %v1265 = vmul.f32 %v1259, 0.35355338
    %v1266 = vadd.f32 %v1262, %v672
    %v1267 = vadd.f32 %v1263, %v674
    %v1268 = vadd.f32 %v1264, %v676
    %v1269 = vadd.f32 %v1265, %v678
    %v1270 = vsel %vm531, %v1266, -inf
    %1271 = vmax.xlane.f32.xlu0 %v1270
    %v1272 = vpop.xlane.xlu0 %1271
    %v1273 = vsel %vm531, %v1267, -inf
    %1274 = vmax.xlane.f32.xlu0 %v1273
    %v1275 = vpop.xlane.xlu0 %1274
    %v1276 = vsel %vm531, %v1268, -inf
    %1277 = vmax.xlane.f32.xlu0 %v1276
    %v1278 = vpop.xlane.xlu0 %1277
    %v1279 = vsel %vm531, %v1269, -inf
    %1280 = vmax.xlane.f32.xlu0 %v1279
    %v1281 = vpop.xlane.xlu0 %1280
    %v1282 = vsub.f32 %v1266, %v1272
    %v1283 = vsub.f32 %v1267, %v1275
    %v1284 = vsub.f32 %v1268, %v1278
    %v1285 = vsub.f32 %v1269, %v1281
    %v1286 = vmul.f32 %v1282, 1.442695
    %v1287 = vpow.pop %v1286
    %v1288 = vmul.f32 %v1283, 1.442695
    %v1289 = vpow.pop %v1288
    %v1290 = vmul.f32 %v1284, 1.442695
    %v1291 = vpow.pop %v1290
    %v1292 = vmul.f32 %v1285, 1.442695
    %v1293 = vpow.pop %v1292
    %v1294 = vsel %vm531, %v1287, 0.0
    %1295 = vadd.xlane.f32.xlu0 %v1294
    %v1296 = vpop.xlane.xlu0 %1295
    %v1297 = vsel %vm531, %v1289, 0.0
    %1298 = vadd.xlane.f32.xlu0 %v1297
    %v1299 = vpop.xlane.xlu0 %1298
    %v1300 = vsel %vm531, %v1291, 0.0
    %1301 = vadd.xlane.f32.xlu0 %v1300
    %v1302 = vpop.xlane.xlu0 %1301
    %v1303 = vsel %vm531, %v1293, 0.0
    %1304 = vadd.xlane.f32.xlu0 %v1303
    %v1305 = vpop.xlane.xlu0 %1304
    %v1306 = vrcp.pop %v1296
    %v1307 = vrcp.pop %v1299
    %v1308 = vrcp.pop %v1302
    %v1309 = vrcp.pop %v1305
    %v1310 = vmul.f32 %v1287, %v1306
    %v1311 = vmul.f32 %v1289, %v1307
    %v1312 = vmul.f32 %v1291, %v1308
    %v1313 = vmul.f32 %v1293, %v1309
    %v1314 = vpack.c.bf16 %v1311, %v1310
    %v1315 = vpack.c.bf16 %v1313, %v1312
    %1317 = vrot.lane.b32.xlu0 %v1200, 64
    %v1318 = vpop.permute.xlu0 %1317
    %v1320 = vmul.f32 %v573, %v1318
    %v1321 = vmul.f32 %v576, %v1318
    %v1322 = vmul.f32 %v581, %v1318
    %v1323 = vmul.f32 %v584, %v1318
    %v1324 = vpack.c.bf16 %v1321, %v1320
    %v1325 = vpack.c.bf16 %v1323, %v1322
    %1328 = vrot.lane.b32.xlu0 %v1324, 64
    %v1329 = vpop.permute.xlu0 %1328
    %1330 = vrot.lane.b32.xlu0 %v1325, 64
    %v1331 = vpop.permute.xlu0 %1330
    %v1335 = vsel %vm531, %v1314, 0
    %v1338 = vsel %vm531, %v1315, 0
    %1340 = vmatprep.subr.bf16.mxu0 0
    %1341 = vmatpush1.bf16.msra.mxu0 %v1329
    %1342 = vmatprep.subr.bf16.mxu0 0
    %1343 = vmatpush1.bf16.msra.mxu0 %v1331
    %1344 = vmatprep.subr.bf16.mxu0 0
    %1345 = vmatpush1.bf16.msra.mxu0 0
    %1346 = vmatprep.subr.bf16.mxu0 0
    %1347 = vmatpush1.bf16.msra.mxu0 0
    %1348 = vmatprep.subr.bf16.mxu0 0
    %1349 = vmatpush1.bf16.msra.mxu0 0
    %1350 = vmatprep.subr.bf16.mxu0 0
    %1351 = vmatpush1.bf16.msra.mxu0 0
    %1352 = vmatprep.subr.bf16.mxu0 0
    %1353 = vmatpush1.bf16.msra.mxu0 0
    %1354 = vmatprep.subr.bf16.mxu0 0
    %1355 = vmatpush1.bf16.msra.mxu0 0
    %1356 = vmatprep.subr.bf16.mxu0 0
    %1357 = vmatpush1.bf16.msra.mxu0 0
    %1358 = vmatprep.subr.bf16.mxu0 0
    %1359 = vmatpush1.bf16.msra.mxu0 0
    %1360 = vmatprep.subr.bf16.mxu0 0
    %1361 = vmatpush1.bf16.msra.mxu0 0
    %1362 = vmatprep.subr.bf16.mxu0 0
    %1363 = vmatpush1.bf16.msra.mxu0 0
    %1364 = vmatprep.subr.bf16.mxu0 0
    %1365 = vmatpush1.bf16.msra.mxu0 0
    %1366 = vmatprep.subr.bf16.mxu0 0
    %1367 = vmatpush1.bf16.msra.mxu0 0
    %1368 = vmatprep.subr.bf16.mxu0 0
    %1369 = vmatpush1.bf16.msra.mxu0 0
    %1370 = vmatprep.subr.bf16.mxu0 0
    %1371 = vmatpush1.bf16.msra.mxu0 0
    %1372 = vmatprep.mubr.bf16.mxu0 0
    %1373 = vmatmul.mubr.bf16.gmra.mrb[0].mxu0 %v1335
    %v1374 = vpop.f32.mrb[0].mxu0
    %v1375 = vadd.f32 0.0, %v1374
    %v1376 = vpop.f32.mrb[0].mxu0
    %v1377 = vpop.f32.mrb[0].mxu0
    %v1378 = vadd.f32 0.0, %v1377
    %v1379 = vpop.f32.mrb[0].mxu0
    %1380 = vmatprep.mubr.bf16.mxu0 0
    %1381 = vmatmul.mubr.bf16.gmra.mrb[0].mxu0 %v1338
    %v1382 = vpop.f32.mrb[0].mxu0
    %v1383 = vadd.f32 0.0, %v1382
    %v1384 = vpop.f32.mrb[0].mxu0
    %v1385 = vpop.f32.mrb[0].mxu0
    %v1386 = vadd.f32 0.0, %v1385
    %v1387 = vpop.f32.mrb[0].mxu0
    %1388 = vdwg.mxu0
    %v1389 = vadd.f32 %v1192, %v1375
    %v1390 = vadd.f32 %v1193, %v1378
    %v1391 = vadd.f32 %v1194, %v1383
    %v1392 = vadd.f32 %v1195, %v1386
    %v1393 = vpack.c.bf16 %v1390, %v1389
    %v1394 = vpack.c.bf16 %v1392, %v1391
    %v1395 = vld [vmem:[%s2 + $0x60] sm:$0xf]
    %v1396 = vld [vmem:[%s2 + $0x64] sm:$0xf]
    %v1397 = vld [vmem:[%s2 + $0x68] sm:$0xf]
    %v1398 = vld [vmem:[%s2 + $0x6c] sm:$0xf]
    %v1399 = vlaneseq
    %v1400 = vshrl.u32 %v1399, 7
    %v1401 = vsub.s32 0, %v1400
    %v1402 = vrot.slane %v31, %v1401
    %v1407 = vunpack.c.l.b16 %v1395
    %v1408 = vunpack.c.l.b16 %v1396
    %v1409 = vunpack.c.l.b16 %v1397
    %v1410 = vunpack.c.l.b16 %v1398
    %v1411 = vpack.c.b16 %v1408, %v1407
    %v1412 = vpack.c.b16 %v1410, %v1409
    %v1416 = vsel %vm531, %v1393, 0
    %v1419 = vsel %vm531, %v1394, 0
    %1421 = vmatprep.subr.bf16.mxu0 0
    %1422 = vmatpush1.bf16.msra.mxu0 %v1411
    %1423 = vmatprep.subr.bf16.mxu0 0
    %1424 = vmatpush1.bf16.msra.mxu0 %v1412
    %1425 = vmatprep.subr.bf16.mxu0 0
    %1426 = vmatpush1.bf16.msra.mxu0 0
    %1427 = vmatprep.subr.bf16.mxu0 0
    %1428 = vmatpush1.bf16.msra.mxu0 0
    %1429 = vmatprep.subr.bf16.mxu0 0
    %1430 = vmatpush1.bf16.msra.mxu0 0
    %1431 = vmatprep.subr.bf16.mxu0 0
    %1432 = vmatpush1.bf16.msra.mxu0 0
    %1433 = vmatprep.subr.bf16.mxu0 0
    %1434 = vmatpush1.bf16.msra.mxu0 0
    %1435 = vmatprep.subr.bf16.mxu0 0
    %1436 = vmatpush1.bf16.msra.mxu0 0
    %1437 = vmatprep.subr.bf16.mxu0 0
    %1438 = vmatpush1.bf16.msra.mxu0 0
    %1439 = vmatprep.subr.bf16.mxu0 0
    %1440 = vmatpush1.bf16.msra.mxu0 0
    %1441 = vmatprep.subr.bf16.mxu0 0
    %1442 = vmatpush1.bf16.msra.mxu0 0
    %1443 = vmatprep.subr.bf16.mxu0 0
    %1444 = vmatpush1.bf16.msra.mxu0 0
    %1445 = vmatprep.subr.bf16.mxu0 0
    %1446 = vmatpush1.bf16.msra.mxu0 0
    %1447 = vmatprep.subr.bf16.mxu0 0
    %1448 = vmatpush1.bf16.msra.mxu0 0
    %1449 = vmatprep.subr.bf16.mxu0 0
    %1450 = vmatpush1.bf16.msra.mxu0 0
    %1451 = vmatprep.subr.bf16.mxu0 0
    %1452 = vmatpush1.bf16.msra.mxu0 0
    %1453 = vmatprep.mubr.bf16.mxu0 0
    %1454 = vmatmul.mubr.bf16.gmra.mrb[0].mxu0 %v1416
    %v1455 = vpop.f32.mrb[0].mxu0
    %v1456 = vadd.f32 %v1402, %v1455
    %v1457 = vpop.f32.mrb[0].mxu0
    %v1458 = vpop.f32.mrb[0].mxu0
    %v1459 = vadd.f32 %v1402, %v1458
    %v1460 = vpop.f32.mrb[0].mxu0
    %1461 = vmatprep.mubr.bf16.mxu0 0
    %1462 = vmatmul.mubr.bf16.gmra.mrb[0].mxu0 %v1419
    %v1463 = vpop.f32.mrb[0].mxu0
    %v1464 = vadd.f32 %v1402, %v1463
    %v1465 = vpop.f32.mrb[0].mxu0
    %v1466 = vpop.f32.mrb[0].mxu0
    %v1467 = vadd.f32 %v1402, %v1466
    %v1468 = vpop.f32.mrb[0].mxu0
    %1469 = vdwg.mxu0
    %v1470 = vadd.f32 %v505, %v1456
    %v1471 = vadd.f32 %v506, %v1459
    %v1472 = vadd.f32 %v507, %v1464
    %v1473 = vadd.f32 %v508, %v1467
    %v1474 = vsel %vm531, %v1470, 0.0
    %1475 = vadd.xlane.f32.xlu0 %v1474
    %v1476 = vpop.xlane.xlu0 %1475
    %v1477 = vsel %vm531, %v1471, 0.0
    %1478 = vadd.xlane.f32.xlu0 %v1477
    %v1479 = vpop.xlane.xlu0 %1478
    %v1480 = vsel %vm531, %v1472, 0.0
    %1481 = vadd.xlane.f32.xlu0 %v1480
    %v1482 = vpop.xlane.xlu0 %1481
    %v1483 = vsel %vm531, %v1473, 0.0
    %1484 = vadd.xlane.f32.xlu0 %v1483
    %v1485 = vpop.xlane.xlu0 %1484
    %v1486 = vrcp.pop 32.0
    %v1487 = vmul.f32 %v1476, %v1486
    %v1488 = vmul.f32 %v1479, %v1486
    %v1489 = vmul.f32 %v1482, %v1486
    %v1490 = vmul.f32 %v1485, %v1486
    %v1491 = vsub.f32 %v1470, %v1487
    %v1492 = vsub.f32 %v1471, %v1488
    %v1493 = vsub.f32 %v1472, %v1489
    %v1494 = vsub.f32 %v1473, %v1490
    %v1495 = vmul.f32 %v1491, %v1491
    %v1496 = vmul.f32 %v1492, %v1492
    %v1497 = vmul.f32 %v1493, %v1493
    %v1498 = vmul.f32 %v1494, %v1494
    %v1499 = vsel %vm531, %v1495, 0.0
    %1500 = vadd.xlane.f32.xlu0 %v1499
    %v1501 = vpop.xlane.xlu0 %1500
    %v1502 = vsel %vm531, %v1496, 0.0
    %1503 = vadd.xlane.f32.xlu0 %v1502
    %v1504 = vpop.xlane.xlu0 %1503
    %v1505 = vsel %vm531, %v1497, 0.0
    %1506 = vadd.xlane.f32.xlu0 %v1505
    %v1507 = vpop.xlane.xlu0 %1506
    %v1508 = vsel %vm531, %v1498, 0.0
    %1509 = vadd.xlane.f32.xlu0 %v1508
    %v1510 = vpop.xlane.xlu0 %1509
    %v1511 = vmul.f32 %v1501, %v1486
    %v1512 = vmul.f32 %v1504, %v1486
    %v1513 = vmul.f32 %v1507, %v1486
    %v1514 = vmul.f32 %v1510, %v1486
    %v1515 = vadd.f32 %v1511, 1e-05
    %v1516 = vadd.f32 %v1512, 1e-05
    %v1517 = vadd.f32 %v1513, 1e-05
    %v1518 = vadd.f32 %v1514, 1e-05
    %v1519 = vrsqrt.pop %v1515
    %v1520 = vrsqrt.pop %v1516
    %v1521 = vrsqrt.pop %v1517
    %v1522 = vrsqrt.pop %v1518
    %v1523 = vmul.f32 %v1491, %v1519
    %v1524 = vmul.f32 %v1492, %v1520
    %v1525 = vmul.f32 %v1493, %v1521
    %v1526 = vmul.f32 %v1494, %v1522
    %v1527 = vlaneseq
    %v1528 = vshrl.u32 %v1527, 7
    %v1529 = vsub.s32 0, %v1528
    %v1530 = vrot.slane %v32, %v1529
    %v1531 = vmul.f32 %v1523, %v1530
    %v1532 = vmul.f32 %v1524, %v1530
    %v1533 = vmul.f32 %v1525, %v1530
    %v1534 = vmul.f32 %v1526, %v1530
    %v1535 = vlaneseq
    %v1536 = vshrl.u32 %v1535, 7
    %v1537 = vsub.s32 0, %v1536
    %v1538 = vrot.slane %v33, %v1537
    %v1539 = vadd.f32 %v1531, %v1538
    %v1540 = vadd.f32 %v1532, %v1538
    %v1541 = vadd.f32 %v1533, %v1538
    %v1542 = vadd.f32 %v1534, %v1538
    %v1543 = vpack.c.bf16 %v1540, %v1539
    %v1544 = vpack.c.bf16 %v1542, %v1541
    %v1545 = vld [vmem:[%s4] sm:$0xf]
    %v1546 = vld [vmem:[%s4 + $0x4] sm:$0xf]
    %v1547 = vld [vmem:[%s4 + $0x8] sm:$0xf]
    %v1548 = vld [vmem:[%s4 + $0xc] sm:$0xf]
    %v1549 = vlaneseq
    %v1550 = vshrl.u32 %v1549, 7
    %v1551 = vsub.s32 0, %v1550
    %v1552 = vrot.slane %v34, %v1551
    %v1557 = vunpack.c.l.b16 %v1545
    %v1558 = vunpack.c.l.b16 %v1546
    %v1559 = vunpack.c.l.b16 %v1547
    %v1560 = vunpack.c.l.b16 %v1548
    %v1561 = vpack.c.b16 %v1558, %v1557
    %v1562 = vpack.c.b16 %v1560, %v1559
    %v1566 = vsel %vm531, %v1543, 0
    %v1569 = vsel %vm531, %v1544, 0
    %1571 = vmatprep.subr.bf16.mxu0 0
    %1572 = vmatpush1.bf16.msra.mxu0 %v1561
    %1573 = vmatprep.subr.bf16.mxu0 0
    %1574 = vmatpush1.bf16.msra.mxu0 %v1562
    %1575 = vmatprep.subr.bf16.mxu0 0
    %1576 = vmatpush1.bf16.msra.mxu0 0
    %1577 = vmatprep.subr.bf16.mxu0 0
    %1578 = vmatpush1.bf16.msra.mxu0 0
    %1579 = vmatprep.subr.bf16.mxu0 0
    %1580 = vmatpush1.bf16.msra.mxu0 0
    %1581 = vmatprep.subr.bf16.mxu0 0
    %1582 = vmatpush1.bf16.msra.mxu0 0
    %1583 = vmatprep.subr.bf16.mxu0 0
    %1584 = vmatpush1.bf16.msra.mxu0 0
    %1585 = vmatprep.subr.bf16.mxu0 0
    %1586 = vmatpush1.bf16.msra.mxu0 0
    %1587 = vmatprep.subr.bf16.mxu0 0
    %1588 = vmatpush1.bf16.msra.mxu0 0
    %1589 = vmatprep.subr.bf16.mxu0 0
    %1590 = vmatpush1.bf16.msra.mxu0 0
    %1591 = vmatprep.subr.bf16.mxu0 0
    %1592 = vmatpush1.bf16.msra.mxu0 0
    %1593 = vmatprep.subr.bf16.mxu0 0
    %1594 = vmatpush1.bf16.msra.mxu0 0
    %1595 = vmatprep.subr.bf16.mxu0 0
    %1596 = vmatpush1.bf16.msra.mxu0 0
    %1597 = vmatprep.subr.bf16.mxu0 0
    %1598 = vmatpush1.bf16.msra.mxu0 0
    %1599 = vmatprep.subr.bf16.mxu0 0
    %1600 = vmatpush1.bf16.msra.mxu0 0
    %1601 = vmatprep.subr.bf16.mxu0 0
    %1602 = vmatpush1.bf16.msra.mxu0 0
    %1603 = vmatprep.mubr.bf16.mxu0 0
    %1604 = vmatmul.mubr.bf16.gmra.mrb[0].mxu0 %v1566
    %v1605 = vpop.f32.mrb[0].mxu0
    %v1606 = vadd.f32 %v1552, %v1605
    %v1607 = vpop.f32.mrb[0].mxu0
    %v1608 = vpop.f32.mrb[0].mxu0
    %v1609 = vadd.f32 %v1552, %v1608
    %v1610 = vpop.f32.mrb[0].mxu0
    %1611 = vmatprep.mubr.bf16.mxu0 0
    %1612 = vmatmul.mubr.bf16.gmra.mrb[0].mxu0 %v1569
    %v1613 = vpop.f32.mrb[0].mxu0
    %v1614 = vadd.f32 %v1552, %v1613
    %v1615 = vpop.f32.mrb[0].mxu0
    %v1616 = vpop.f32.mrb[0].mxu0
    %v1617 = vadd.f32 %v1552, %v1616
    %v1618 = vpop.f32.mrb[0].mxu0
    %1619 = vdwg.mxu0
    %v1620 = vmax.f32 %v1606, 0.0
    %v1621 = vmax.f32 %v1609, 0.0
    %v1622 = vmax.f32 %v1614, 0.0
    %v1623 = vmax.f32 %v1617, 0.0
    %v1624 = vpack.c.bf16 %v1621, %v1620
    %v1625 = vpack.c.bf16 %v1623, %v1622
    %v1626 = vld [vmem:[%s2 + $0x70] sm:$0xf]
    %v1627 = vld [vmem:[%s2 + $0x74] sm:$0xf]
    %v1628 = vld [vmem:[%s2 + $0x78] sm:$0xf]
    %v1629 = vld [vmem:[%s2 + $0x7c] sm:$0xf]
    %v1630 = vld [vmem:[%s2 + $0x80] sm:$0xf]
    %v1631 = vld [vmem:[%s2 + $0x84] sm:$0xf]
    %v1632 = vld [vmem:[%s2 + $0x88] sm:$0xf]
    %v1633 = vld [vmem:[%s2 + $0x8c] sm:$0xf]
    %v1634 = vld [vmem:[%s2 + $0x90] sm:$0xf]
    %v1635 = vld [vmem:[%s2 + $0x94] sm:$0xf]
    %v1636 = vld [vmem:[%s2 + $0x98] sm:$0xf]
    %v1637 = vld [vmem:[%s2 + $0x9c] sm:$0xf]
    %v1638 = vld [vmem:[%s2 + $0xa0] sm:$0xf]
    %v1639 = vld [vmem:[%s2 + $0xa4] sm:$0xf]
    %v1640 = vld [vmem:[%s2 + $0xa8] sm:$0xf]
    %v1641 = vld [vmem:[%s2 + $0xac] sm:$0xf]
    %v1642 = vlaneseq
    %v1643 = vshrl.u32 %v1642, 7
    %v1644 = vsub.s32 0, %v1643
    %v1645 = vrot.slane %v35, %v1644
    %v1662 = vunpack.c.l.b16 %v1626
    %v1663 = vunpack.c.l.b16 %v1627
    %v1664 = vunpack.c.l.b16 %v1628
    %v1665 = vunpack.c.l.b16 %v1629
    %v1666 = vunpack.c.l.b16 %v1630
    %v1667 = vunpack.c.l.b16 %v1631
    %v1668 = vunpack.c.l.b16 %v1632
    %v1669 = vunpack.c.l.b16 %v1633
    %v1670 = vunpack.c.l.b16 %v1634
    %v1671 = vunpack.c.l.b16 %v1635
    %v1672 = vunpack.c.l.b16 %v1636
    %v1673 = vunpack.c.l.b16 %v1637
    %v1674 = vunpack.c.l.b16 %v1638
    %v1675 = vunpack.c.l.b16 %v1639
    %v1676 = vunpack.c.l.b16 %v1640
    %v1677 = vunpack.c.l.b16 %v1641
    %v1678 = vpack.c.b16 %v1663, %v1662
    %v1679 = vpack.c.b16 %v1665, %v1664
    %v1680 = vpack.c.b16 %v1667, %v1666
    %v1681 = vpack.c.b16 %v1669, %v1668
    %v1682 = vpack.c.b16 %v1671, %v1670
    %v1683 = vpack.c.b16 %v1673, %v1672
    %v1684 = vpack.c.b16 %v1675, %v1674
    %v1685 = vpack.c.b16 %v1677, %v1676
    %1694 = vmatprep.subr.bf16.mxu0 0
    %1695 = vmatpush1.bf16.msra.mxu0 %v1678
    %1696 = vmatprep.subr.bf16.mxu0 0
    %1697 = vmatpush1.bf16.msra.mxu0 %v1679
    %1698 = vmatprep.subr.bf16.mxu0 0
    %1699 = vmatpush1.bf16.msra.mxu0 %v1680
    %1700 = vmatprep.subr.bf16.mxu0 0
    %1701 = vmatpush1.bf16.msra.mxu0 %v1681
    %1702 = vmatprep.subr.bf16.mxu0 0
    %1703 = vmatpush1.bf16.msra.mxu0 %v1682
    %1704 = vmatprep.subr.bf16.mxu0 0
    %1705 = vmatpush1.bf16.msra.mxu0 %v1683
    %1706 = vmatprep.subr.bf16.mxu0 0
    %1707 = vmatpush1.bf16.msra.mxu0 %v1684
    %1708 = vmatprep.subr.bf16.mxu0 0
    %1709 = vmatpush1.bf16.msra.mxu0 %v1685
    %1710 = vmatprep.subr.bf16.mxu0 0
    %1711 = vmatpush1.bf16.msra.mxu0 0
    %1712 = vmatprep.subr.bf16.mxu0 0
    %1713 = vmatpush1.bf16.msra.mxu0 0
    %1714 = vmatprep.subr.bf16.mxu0 0
    %1715 = vmatpush1.bf16.msra.mxu0 0
    %1716 = vmatprep.subr.bf16.mxu0 0
    %1717 = vmatpush1.bf16.msra.mxu0 0
    %1718 = vmatprep.subr.bf16.mxu0 0
    %1719 = vmatpush1.bf16.msra.mxu0 0
    %1720 = vmatprep.subr.bf16.mxu0 0
    %1721 = vmatpush1.bf16.msra.mxu0 0
    %1722 = vmatprep.subr.bf16.mxu0 0
    %1723 = vmatpush1.bf16.msra.mxu0 0
    %1724 = vmatprep.subr.bf16.mxu0 0
    %1725 = vmatpush1.bf16.msra.mxu0 0
    %1726 = vmatprep.mubr.bf16.mxu0 0
    %1727 = vmatmul.mubr.bf16.gmra.mrb[0].mxu0 %v1624
    %v1728 = vpop.f32.mrb[0].mxu0
    %v1729 = vadd.f32 %v1645, %v1728
    %v1730 = vpop.f32.mrb[0].mxu0
    %v1731 = vpop.f32.mrb[0].mxu0
    %v1732 = vadd.f32 %v1645, %v1731
    %v1733 = vpop.f32.mrb[0].mxu0
    %1734 = vmatprep.mubr.bf16.mxu0 0
    %1735 = vmatmul.mubr.bf16.gmra.mrb[0].mxu0 %v1625
    %v1736 = vpop.f32.mrb[0].mxu0
    %v1737 = vadd.f32 %v1645, %v1736
    %v1738 = vpop.f32.mrb[0].mxu0
    %v1739 = vpop.f32.mrb[0].mxu0
    %v1740 = vadd.f32 %v1645, %v1739
    %v1741 = vpop.f32.mrb[0].mxu0
    %1742 = vdwg.mxu0
    %v1743 = vadd.f32 %v1539, %v1729
    %v1744 = vadd.f32 %v1540, %v1732
    %v1745 = vadd.f32 %v1541, %v1737
    %v1746 = vadd.f32 %v1542, %v1740
    %v1747 = vsel %vm531, %v1743, 0.0
    %1748 = vadd.xlane.f32.xlu0 %v1747
    %v1749 = vpop.xlane.xlu0 %1748
    %v1750 = vsel %vm531, %v1744, 0.0
    %1751 = vadd.xlane.f32.xlu0 %v1750
    %v1752 = vpop.xlane.xlu0 %1751
    %v1753 = vsel %vm531, %v1745, 0.0
    %1754 = vadd.xlane.f32.xlu0 %v1753
    %v1755 = vpop.xlane.xlu0 %1754
    %v1756 = vsel %vm531, %v1746, 0.0
    %1757 = vadd.xlane.f32.xlu0 %v1756
    %v1758 = vpop.xlane.xlu0 %1757
    %v1759 = vmul.f32 %v1749, %v1486
    %v1760 = vmul.f32 %v1752, %v1486
    %v1761 = vmul.f32 %v1755, %v1486
    %v1762 = vmul.f32 %v1758, %v1486
    %v1763 = vsub.f32 %v1743, %v1759
    %v1764 = vsub.f32 %v1744, %v1760
    %v1765 = vsub.f32 %v1745, %v1761
    %v1766 = vsub.f32 %v1746, %v1762
    %v1767 = vmul.f32 %v1763, %v1763
    %v1768 = vmul.f32 %v1764, %v1764
    %v1769 = vmul.f32 %v1765, %v1765
    %v1770 = vmul.f32 %v1766, %v1766
    %v1771 = vsel %vm531, %v1767, 0.0
    %1772 = vadd.xlane.f32.xlu0 %v1771
    %v1773 = vpop.xlane.xlu0 %1772
    %v1774 = vsel %vm531, %v1768, 0.0
    %1775 = vadd.xlane.f32.xlu0 %v1774
    %v1776 = vpop.xlane.xlu0 %1775
    %v1777 = vsel %vm531, %v1769, 0.0
    %1778 = vadd.xlane.f32.xlu0 %v1777
    %v1779 = vpop.xlane.xlu0 %1778
    %v1780 = vsel %vm531, %v1770, 0.0
    %1781 = vadd.xlane.f32.xlu0 %v1780
    %v1782 = vpop.xlane.xlu0 %1781
    %v1783 = vmul.f32 %v1773, %v1486
    %v1784 = vmul.f32 %v1776, %v1486
    %v1785 = vmul.f32 %v1779, %v1486
    %v1786 = vmul.f32 %v1782, %v1486
    %v1787 = vadd.f32 %v1783, 1e-05
    %v1788 = vadd.f32 %v1784, 1e-05
    %v1789 = vadd.f32 %v1785, 1e-05
    %v1790 = vadd.f32 %v1786, 1e-05
    %v1791 = vrsqrt.pop %v1787
    %v1792 = vrsqrt.pop %v1788
    %v1793 = vrsqrt.pop %v1789
    %v1794 = vrsqrt.pop %v1790
    %v1795 = vmul.f32 %v1763, %v1791
    %v1796 = vmul.f32 %v1764, %v1792
    %v1797 = vmul.f32 %v1765, %v1793
    %v1798 = vmul.f32 %v1766, %v1794
    %v1799 = vlaneseq
    %v1800 = vshrl.u32 %v1799, 7
    %v1801 = vsub.s32 0, %v1800
    %v1802 = vrot.slane %v36, %v1801
    %v1803 = vmul.f32 %v1795, %v1802
    %v1804 = vmul.f32 %v1796, %v1802
    %v1805 = vmul.f32 %v1797, %v1802
    %v1806 = vmul.f32 %v1798, %v1802
    %v1807 = vlaneseq
    %v1808 = vshrl.u32 %v1807, 7
    %v1809 = vsub.s32 0, %v1808
    %v1810 = vrot.slane %v37, %v1809
    %v1811 = vadd.f32 %v1803, %v1810
    %v1812 = vadd.f32 %v1804, %v1810
    %v1813 = vadd.f32 %v1805, %v1810
    %v1814 = vadd.f32 %v1806, %v1810
    %v1815 = vld [vmem:[%s4 + $0x10] sm:$0xf]
    %v1816 = vld [vmem:[%s4 + $0x14] sm:$0xf]
    %v1817 = vld [vmem:[%s4 + $0x18] sm:$0xf]
    %v1818 = vld [vmem:[%s4 + $0x1c] sm:$0xf]
    %v1819 = vsel %vm531, %v1811, -inf
    %v1820 = vsel %vm531, %v1812, -inf
    %v1821 = vmax.f32 %v1819, %v1820
    %v1822 = vrot.slane %v1821, 4
    %v1823 = vmax.f32 %v1821, %v1822
    %v1824 = vrot.slane %v1823, 2
    %v1825 = vmax.f32 %v1823, %v1824
    %v1826 = vrot.slane %v1825, 1
    %v1827 = vmax.f32 %v1825, %v1826
    %v1828 = vpack.c.bf16 %v1827, %v1827
    %v1833 = vunpack.c.l.b16 %v1815
    %v1834 = vunpack.c.l.b16 %v1816
    %v1835 = vunpack.c.l.b16 %v1817
    %v1836 = vunpack.c.l.b16 %v1818
    %v1837 = vpack.c.b16 %v1834, %v1833
    %v1838 = vpack.c.b16 %v1836, %v1835
    %v1842 = vsel %vm531, %v1828, 0
    %1844 = vmatprep.subr.bf16.mxu0 0
    %1845 = vmatpush1.bf16.msra.mxu0 %v1837
    %1846 = vmatprep.subr.bf16.mxu0 0
    %1847 = vmatpush1.bf16.msra.mxu0 %v1838
    %1848 = vmatprep.subr.bf16.mxu0 0
    %1849 = vmatpush1.bf16.msra.mxu0 0
    %1850 = vmatprep.subr.bf16.mxu0 0
    %1851 = vmatpush1.bf16.msra.mxu0 0
    %1852 = vmatprep.subr.bf16.mxu0 0
    %1853 = vmatpush1.bf16.msra.mxu0 0
    %1854 = vmatprep.subr.bf16.mxu0 0
    %1855 = vmatpush1.bf16.msra.mxu0 0
    %1856 = vmatprep.subr.bf16.mxu0 0
    %1857 = vmatpush1.bf16.msra.mxu0 0
    %1858 = vmatprep.subr.bf16.mxu0 0
    %1859 = vmatpush1.bf16.msra.mxu0 0
    %1860 = vmatprep.subr.bf16.mxu0 0
    %1861 = vmatpush1.bf16.msra.mxu0 0
    %1862 = vmatprep.subr.bf16.mxu0 0
    %1863 = vmatpush1.bf16.msra.mxu0 0
    %1864 = vmatprep.subr.bf16.mxu0 0
    %1865 = vmatpush1.bf16.msra.mxu0 0
    %1866 = vmatprep.subr.bf16.mxu0 0
    %1867 = vmatpush1.bf16.msra.mxu0 0
    %1868 = vmatprep.subr.bf16.mxu0 0
    %1869 = vmatpush1.bf16.msra.mxu0 0
    %1870 = vmatprep.subr.bf16.mxu0 0
    %1871 = vmatpush1.bf16.msra.mxu0 0
    %1872 = vmatprep.subr.bf16.mxu0 0
    %1873 = vmatpush1.bf16.msra.mxu0 0
    %1874 = vmatprep.subr.bf16.mxu0 0
    %1875 = vmatpush1.bf16.msra.mxu0 0
    %1876 = vmatprep.mubr.bf16.mxu0 0
    %1877 = vmatmul.mubr.bf16.gmra.mrb[0].mxu0 %v1842
    %v1878 = vpop.f32.mrb[0].mxu0
    %v1879 = vadd.f32 %v38, %v1878
    %v1880 = vpop.f32.mrb[0].mxu0
    %v1881 = vpop.f32.mrb[0].mxu0
    %v1882 = vpop.f32.mrb[0].mxu0
    %1883 = vdwg.mxu0
    %1884 = vst [vmem:[#allocation2] sm:$0x1] %v1879
    %v1885 = vsel %vm531, %v1813, -inf
    %v1886 = vsel %vm531, %v1814, -inf
    %v1887 = vmax.f32 %v1885, %v1886
    %v1888 = vrot.slane %v1887, 4
    %v1889 = vmax.f32 %v1887, %v1888
    %v1890 = vrot.slane %v1889, 2
    %v1891 = vmax.f32 %v1889, %v1890
    %v1892 = vrot.slane %v1891, 1
    %v1893 = vmax.f32 %v1891, %v1892
    %v1894 = vpack.c.bf16 %v1893, %v1893
    %v1896 = vsel %vm531, %v1894, 0
    %1898 = vmatprep.subr.bf16.mxu0 0
    %1899 = vmatpush1.bf16.msra.mxu0 %v1837
    %1900 = vmatprep.subr.bf16.mxu0 0
    %1901 = vmatpush1.bf16.msra.mxu0 %v1838
    %1902 = vmatprep.subr.bf16.mxu0 0
    %1903 = vmatpush1.bf16.msra.mxu0 0
    %1904 = vmatprep.subr.bf16.mxu0 0
    %1905 = vmatpush1.bf16.msra.mxu0 0
    %1906 = vmatprep.subr.bf16.mxu0 0
    %1907 = vmatpush1.bf16.msra.mxu0 0
    %1908 = vmatprep.subr.bf16.mxu0 0
    %1909 = vmatpush1.bf16.msra.mxu0 0
    %1910 = vmatprep.subr.bf16.mxu0 0
    %1911 = vmatpush1.bf16.msra.mxu0 0
    %1912 = vmatprep.subr.bf16.mxu0 0
    %1913 = vmatpush1.bf16.msra.mxu0 0
    %1914 = vmatprep.subr.bf16.mxu0 0
    %1915 = vmatpush1.bf16.msra.mxu0 0
    %1916 = vmatprep.subr.bf16.mxu0 0
    %1917 = vmatpush1.bf16.msra.mxu0 0
    %1918 = vmatprep.subr.bf16.mxu0 0
    %1919 = vmatpush1.bf16.msra.mxu0 0
    %1920 = vmatprep.subr.bf16.mxu0 0
    %1921 = vmatpush1.bf16.msra.mxu0 0
    %1922 = vmatprep.subr.bf16.mxu0 0
    %1923 = vmatpush1.bf16.msra.mxu0 0
    %1924 = vmatprep.subr.bf16.mxu0 0
    %1925 = vmatpush1.bf16.msra.mxu0 0
    %1926 = vmatprep.subr.bf16.mxu0 0
    %1927 = vmatpush1.bf16.msra.mxu0 0
    %1928 = vmatprep.subr.bf16.mxu0 0
    %1929 = vmatpush1.bf16.msra.mxu0 0
    %1930 = vmatprep.mubr.bf16.mxu0 0
    %1931 = vmatmul.mubr.bf16.gmra.mrb[0].mxu0 %v1896
    %v1932 = vpop.f32.mrb[0].mxu0
    %v1933 = vadd.f32 %v38, %v1932
    %v1934 = vpop.f32.mrb[0].mxu0
    %v1935 = vpop.f32.mrb[0].mxu0
    %v1936 = vpop.f32.mrb[0].mxu0
    %1937 = vdwg.mxu0
    %1938 = vst [vmem:[#allocation2 + $0x1] sm:$0x1] %v1933
    // Predicated region
    $region30: #{net_forward.1} parent=1 // pred_check
      _
    $region31: #{net_forward.1} parent=1 // pred_check_branch
      %1940 = sbr.rel (0) target = $region33
    $region32: #{net_forward.1} parent=1 // pred_region
      %s1942 = ssub.s32 32, 32
      %1943 = vsyncadd [#allocation3], %s1942
      %s1945 = sshll.u32 [#allocation2], 4
      %s1946 = int_to_ptr.vmem [resolvable:$true] %s1945
      %1948 = dma.vmem_to_hbm [thread:$0]  %s1946, 32, %s7, [#allocation3]
    $region33: #{net_forward.1} parent=1 // pred_fallthru
      _
    // Predicated region
    $region34: #{net_forward.1} parent=1 // pred_check
      _
    $region35: #{net_forward.1} parent=1 // pred_check_branch
      %1950 = sbr.rel (0) target = $region37
    $region36: #{net_forward.1} parent=1 // pred_region
      %1951 = dma.done [#allocation3], 32
    $region37: #{net_forward.1} parent=1 // pred_fallthru
      _
    %1952 = vsyncpa [#allocation3], 1

</llo_original>
